<compile_context>
chip_gen: v7x
topology: tpu7x:2x2x1
jax: 0.10.0
libtpu: 0.0.40
codegen_flags: <defaults>
</compile_context>

<pallas_src>
import functools

import jax
import jax.numpy as jnp
from jax import lax
from jax.experimental import pallas as pl
from jax.experimental.pallas import tpu as pltpu

_NEG_BIG = -9e15
_LANES = 128


# ----------------------------------------------------------------------------
# Fused GAT forward kernel
# ----------------------------------------------------------------------------
def _attend(wh, a1_row, a2_row, mask, alpha):
    """Masked graph attention: softmax_j(leakyrelu(e_ij)) @ Wh.

    wh: (N, F) features after the linear map; a1_row/a2_row: (1, F) halves of
    the attention vector (pre-transposed in the wrapper); mask: (N, N) bool.
    """
    # e[i, j] = leakyrelu( <wh[i], a1> + <wh[j], a2> )
    wh1 = jnp.sum(wh * a1_row, axis=1, keepdims=True)                  # (N, 1) VPU mul + lane reduce
    wh2 = lax.dot_general(a2_row, wh, (((1,), (1,)), ((), ())),
                          preferred_element_type=jnp.float32)          # (1, N) lane-dense MXU row
    e = wh1 + wh2                                                      # (N, N)
    e = jnp.where(e > 0, e, alpha * e)                                 # LeakyReLU
    e = jnp.where(mask, e, _NEG_BIG)                                   # adjacency mask
    e = jnp.exp(e - jnp.max(e, axis=1, keepdims=True))
    att = e * pl.reciprocal(jnp.sum(e, axis=1, keepdims=True), approx=True)  # EUP divide
    return jnp.dot(att, wh, preferred_element_type=jnp.float32)        # (N, F)


def _gat_fused_kernel(x_ref, adj_ref, attw_ref, atta1_ref, atta2_ref,
                      outw_ref, oa1_ref, oa2_ref, dw_ref, db_ref,
                      ow_ref, ob_ref, out_ref, *, alpha, nheads, nlinear, nclass):
    x = x_ref[...].astype(jnp.float32)        # (N, F_in)
    mask = adj_ref[...] > 0                   # (N, N) — computed once, reused by both GALs

    # --- multi-head GAL + re-associated "concat @ W_out" ---------------------
    # cat([h_0 .. h_{nheads-1}], axis=1) @ W_out == sum_h h_h @ W_out[h-block]
    wh_o = None
    for h in range(nheads):                   # static unroll over heads
        wh = jnp.dot(x, attw_ref[h], preferred_element_type=jnp.float32)     # (N, nhid)
        hp = _attend(wh, atta1_ref[h], atta2_ref[h], mask, alpha)            # (N, nhid)
        hp = jnp.where(hp > 0, hp, jnp.exp(jnp.minimum(hp, 0.0)) - 1.0)      # ELU (clamped exp)
        contrib = jnp.dot(hp, outw_ref[h], preferred_element_type=jnp.float32)  # (N, H)
        wh_o = contrib if wh_o is None else wh_o + contrib

    # --- output GAL (no ELU) --------------------------------------------------
    xo = _attend(wh_o, oa1_ref[...], oa2_ref[...], mask, alpha)        # (N, H)

    # --- graph mean-pool + dense MLP stack ------------------------------------
    g = jnp.mean(xo, axis=0, keepdims=True)                            # (1, H)
    for i in range(nlinear):                                           # static unroll
        g = jnp.dot(g, dw_ref[i], preferred_element_type=jnp.float32) + db_ref[i]
        g = jnp.maximum(g, 0.0)                                        # ReLU (dropout = id in eval)

    # --- class head + softmax (lane-padded to 128 for a dense store) ---------
    o = jnp.dot(g, ow_ref[...], preferred_element_type=jnp.float32) + ob_ref[...]   # (1, 128)
    col = lax.broadcasted_iota(jnp.int32, o.shape, 1)
    o = jnp.where(col < nclass, o, _NEG_BIG)                           # mask padded lanes
    o = o - jnp.max(o, axis=1, keepdims=True)
    eo = jnp.exp(o)
    p = eo * pl.reciprocal(jnp.sum(eo, axis=1, keepdims=True), approx=True)
    out_ref[...] = jnp.broadcast_to(p, out_ref.shape).astype(out_ref.dtype)   # dense (8,128) store


def gat_forward(params, X, A, A2, *, alpha, use_distance_aware_adj):
    """Full fused GAT forward.  Returns (1, nclass) class probabilities."""
    adj = A2 if use_distance_aware_adj else A

    att_w = jnp.stack([w for (w, _) in params["attentions"]])           # (nheads, F_in, nhid)
    nheads, _, nhid = att_w.shape
    att_a1 = jnp.stack([a[:nhid, :].T for (_, a) in params["attentions"]])   # (nheads, 1, nhid)
    att_a2 = jnp.stack([a[nhid:, :].T for (_, a) in params["attentions"]])   # (nheads, 1, nhid)

    ow, oa = params["out_att"]                                          # (nhid*nheads, H), (2H, 1)
    hdim = ow.shape[1]
    ow_blocks = ow.reshape(nheads, nhid, hdim)                          # per-head row blocks of W_out
    oa1 = oa[:hdim, :].T                                                # (1, H)
    oa2 = oa[hdim:, :].T                                                # (1, H)

    dense_w, dense_b = params["dense_w"], params["dense_b"]
    nlinear = dense_w.shape[0]
    out_w, out_b = params["out_w"], params["out_b"]
    nclass = out_w.shape[1]

    # Pad the class dim to a full 128-lane slab so the kernel's output store is dense.
    out_w_pad = jnp.zeros((hdim, _LANES), jnp.float32).at[:, :nclass].set(out_w)
    out_b_pad = jnp.zeros((1, _LANES), jnp.float32).at[:, :nclass].set(out_b)

    kernel = functools.partial(_gat_fused_kernel, alpha=alpha, nheads=nheads,
                               nlinear=nlinear, nclass=nclass)
    vmem = functools.partial(pl.BlockSpec, memory_space=pltpu.MemorySpace.VMEM)
    out_pad = pl.pallas_call(
        kernel,
        out_shape=jax.ShapeDtypeStruct((8, _LANES), jnp.float32),
        in_specs=[vmem() for _ in range(12)],
        out_specs=vmem(),
    )(X, adj, att_w, att_a1, att_a2, ow_blocks, oa1, oa2,
      dense_w, dense_b, out_w_pad, out_b_pad)
    return out_pad[0:1, :nclass]

# TODO(synk): for large graphs (N >~ 1.5-2K on v7x's 64 MiB VMEM) the full (N,N)
# e/att buffers need a flash-style (Nq,Nk)-tiled softmax path + bf16 matmul
# inputs; unnecessary at these shapes where the model is launch-latency bound.


# ----------------------------------------------------------------------------
# Pure-JAX reference for correctness check
# ----------------------------------------------------------------------------
def _gal_ref(x, w, a, adj, alpha, concat):
    wh = x @ w
    f_out = w.shape[1]
    e = wh @ a[:f_out] + (wh @ a[f_out:]).T
    e = jnp.where(e > 0, e, alpha * e)
    att = jnp.where(adj > 0, e, -9e15)
    att = jax.nn.softmax(att, axis=1)
    hp = att @ wh
    return jnp.where(hp > 0, hp, jnp.exp(jnp.minimum(hp, 0.0)) - 1.0) if concat else hp


def gat_ref(params, X, A, A2, *, alpha, use_distance_aware_adj):
    adj = A2 if use_distance_aware_adj else A
    Xc = jnp.concatenate(
        [_gal_ref(X, w, a, adj, alpha, True) for (w, a) in params["attentions"]], axis=1)
    Xo = _gal_ref(Xc, params["out_att"][0], params["out_att"][1], adj, alpha, False)
    g = jnp.mean(Xo, axis=0, keepdims=True)
    for i in range(params["dense_w"].shape[0]):
        g = jnp.maximum(g @ params["dense_w"][i] + params["dense_b"][i], 0.0)
    o = g @ params["out_w"] + params["out_b"]
    return jax.nn.softmax(o, axis=1)


# ----------------------------------------------------------------------------
if __name__ == "__main__":
    key = jax.random.PRNGKey(0)

    # small shapes consistent with the module
    N = 16                    # number of graph nodes
    nfeat, nhid, nclass = 16, 8, 4
    nheads, nlinear, nhid_linear = 2, 2, 16
    alpha = 0.2
    use_distance_aware_adj = True

    keys = jax.random.split(key, 8 + 2 * nheads + 2 * nlinear)
    ki = iter(keys)

    # inputs
    X = jax.random.normal(next(ki), (N, nfeat), jnp.float32)
    A = (jax.random.uniform(next(ki), (N, N)) < 0.4).astype(jnp.float32)
    A = jnp.maximum(A, jnp.eye(N, dtype=jnp.float32))          # self loops
    A2 = A * jax.random.uniform(next(ki), (N, N), jnp.float32, 0.1, 1.0)  # distance-aware

    def xavier(k, shape, gain=1.414):
        fan_in, fan_out = shape[0], shape[-1]
        bound = gain * (6.0 / (fan_in + fan_out)) ** 0.5
        return jax.random.uniform(k, shape, jnp.float32, -bound, bound)

    # parameters (deterministic init; Linear stored as (in, out) so y = x @ W + b)
    attentions = []
    for _ in range(nheads):
        attentions.append((xavier(next(ki), (nfeat, nhid)),
                           xavier(next(ki), (2 * nhid, 1))))
    out_att = (xavier(next(ki), (nhid * nheads, nhid_linear)),
               xavier(next(ki), (2 * nhid_linear, 1)))
    dense_w = jnp.stack([xavier(next(ki), (nhid_linear, nhid_linear), 1.0)
                         for _ in range(nlinear)])             # (nlinear, H, H)
    dense_b = jnp.stack([0.01 * jnp.ones((1, nhid_linear), jnp.float32)
                         for _ in range(nlinear)])             # (nlinear, 1, H)
    out_w = xavier(next(ki), (nhid_linear, nclass), 1.0)
    out_b = jnp.zeros((1, nclass), jnp.float32)

    params = dict(attentions=attentions, out_att=out_att,
                  dense_w=dense_w, dense_b=dense_b, out_w=out_w, out_b=out_b)

    out = gat_forward(params, X, A, A2, alpha=alpha,
                      use_distance_aware_adj=use_distance_aware_adj)
    out = jax.block_until_ready(out)

    ref = gat_ref(params, X, A, A2, alpha=alpha,
                  use_distance_aware_adj=use_distance_aware_adj)
    ref = jax.block_until_ready(ref)

    assert out.shape == (1, nclass)
    assert bool(jnp.all(jnp.isfinite(out)))
    assert bool(jnp.abs(jnp.sum(out) - 1.0) < 1e-2)
    # Tolerance accounts for the approximate EUP reciprocal used in the three
    # softmax normalizations (exact math otherwise).
    assert bool(jnp.allclose(out, ref, rtol=5e-2, atol=5e-3)), (out, ref)

    # TODO(synk): dropout is train-mode-only stochasticity; eval semantics (identity) implemented.
    print("KERNEL_OK")
</pallas_src>

<mosaic_0001>
module attributes {stable_mosaic.version = 11 : i64} {
  func.func @_gat_fused_kernel(%arg0: memref<16x16xf32, #tpu.memory_space<vmem>>, %arg1: memref<16x16xf32, #tpu.memory_space<vmem>>, %arg2: memref<2x16x8xf32, #tpu.memory_space<vmem>>, %arg3: memref<2x1x8xf32, #tpu.memory_space<vmem>>, %arg4: memref<2x1x8xf32, #tpu.memory_space<vmem>>, %arg5: memref<2x8x16xf32, #tpu.memory_space<vmem>>, %arg6: memref<1x16xf32, #tpu.memory_space<vmem>>, %arg7: memref<1x16xf32, #tpu.memory_space<vmem>>, %arg8: memref<2x16x16xf32, #tpu.memory_space<vmem>>, %arg9: memref<2x1x16xf32, #tpu.memory_space<vmem>>, %arg10: memref<16x128xf32, #tpu.memory_space<vmem>>, %arg11: memref<1x128xf32, #tpu.memory_space<vmem>>, %arg12: memref<8x128xf32, #tpu.memory_space<vmem>>) attributes {dimension_semantics = [], scalar_prefetch = 0 : i64, scratch_operands = 0 : i64, tpu.core_type = #tpu.core_type<tc>} {
    %c0 = arith.constant 0 : index
    %c0_0 = arith.constant 0 : index
    %0 = vector.load %arg0[%c0, %c0_0] : memref<16x16xf32, #tpu.memory_space<vmem>>, vector<16x16xf32>
    %c0_1 = arith.constant 0 : index
    %c0_2 = arith.constant 0 : index
    %1 = vector.load %arg1[%c0_1, %c0_2] : memref<16x16xf32, #tpu.memory_space<vmem>>, vector<16x16xf32>
    %cst = arith.constant 0.000000e+00 : f32
    %2 = vector.broadcast %cst : f32 to vector<16x16xf32>
    %3 = arith.cmpf ogt, %1, %2 : vector<16x16xf32>
    %c0_3 = arith.constant 0 : index
    %c0_4 = arith.constant 0 : index
    %c0_5 = arith.constant 0 : index
    %4 = vector.load %arg2[%c0_3, %c0_4, %c0_5] : memref<2x16x8xf32, #tpu.memory_space<vmem>>, vector<1x16x8xf32>
    %5 = vector.shape_cast %4 : vector<1x16x8xf32> to vector<16x8xf32>
    %cst_6 = arith.constant dense<0.000000e+00> : vector<16x8xf32>
    %6 = tpu.matmul %0, %5, %cst_6 {dimension_numbers = #tpu.dot_dimension_numbers<[1], [0], [0], [1], [0, 0, 1, 1], [], []>} : vector<16x16xf32>, vector<16x8xf32>, vector<16x8xf32> -> vector<16x8xf32>
    %c0_7 = arith.constant 0 : index
    %c0_8 = arith.constant 0 : index
    %c0_9 = arith.constant 0 : index
    %7 = vector.load %arg3[%c0_7, %c0_8, %c0_9] : memref<2x1x8xf32, #tpu.memory_space<vmem>>, vector<1x1x8xf32>
    %8 = vector.shape_cast %7 : vector<1x1x8xf32> to vector<1x8xf32>
    %c0_10 = arith.constant 0 : index
    %c0_11 = arith.constant 0 : index
    %c0_12 = arith.constant 0 : index
    %9 = vector.load %arg4[%c0_10, %c0_11, %c0_12] : memref<2x1x8xf32, #tpu.memory_space<vmem>>, vector<1x1x8xf32>
    %10 = vector.shape_cast %9 : vector<1x1x8xf32> to vector<1x8xf32>
    %11 = vector.broadcast %8 : vector<1x8xf32> to vector<16x8xf32>
    %12 = arith.mulf %6, %11 : vector<16x8xf32>
    %cst_13 = arith.constant dense<0.000000e+00> : vector<16xf32>
    %13 = vector.multi_reduction <add>, %12, %cst_13 [1] : vector<16x8xf32> to vector<16xf32>
    %14 = vector.shape_cast %13 : vector<16xf32> to vector<16x1xf32>
    %cst_14 = arith.constant dense<0.000000e+00> : vector<1x16xf32>
    %15 = tpu.matmul %10, %6, %cst_14 {dimension_numbers = #tpu.dot_dimension_numbers<[1], [1], [0], [0], [0, 0, 1, 0], [], []>} : vector<1x8xf32>, vector<16x8xf32>, vector<1x16xf32> -> vector<1x16xf32>
    %16 = vector.broadcast %14 : vector<16x1xf32> to vector<16x16xf32>
    %17 = vector.broadcast %15 : vector<1x16xf32> to vector<16x16xf32>
    %18 = arith.addf %16, %17 : vector<16x16xf32>
    %cst_15 = arith.constant 0.000000e+00 : f32
    %19 = vector.broadcast %cst_15 : f32 to vector<16x16xf32>
    %20 = arith.cmpf ogt, %18, %19 : vector<16x16xf32>
    %cst_16 = arith.constant 2.000000e-01 : f32
    %21 = vector.broadcast %cst_16 : f32 to vector<16x16xf32>
    %22 = arith.mulf %21, %18 : vector<16x16xf32>
    %23 = arith.select %20, %18, %22 : vector<16x16xi1>, vector<16x16xf32>
    %cst_17 = arith.constant -9.000000e+15 : f32
    %24 = vector.broadcast %cst_17 : f32 to vector<16x16xf32>
    %25 = arith.select %3, %23, %24 : vector<16x16xi1>, vector<16x16xf32>
    %cst_18 = arith.constant dense<0xFF800000> : vector<16xf32>
    %26 = vector.multi_reduction <maximumf>, %25, %cst_18 [1] : vector<16x16xf32> to vector<16xf32>
    %27 = vector.shape_cast %26 : vector<16xf32> to vector<16x1xf32>
    %28 = vector.broadcast %27 : vector<16x1xf32> to vector<16x16xf32>
    %29 = arith.subf %25, %28 : vector<16x16xf32>
    %30 = math.exp %29 : vector<16x16xf32>
    %cst_19 = arith.constant dense<0.000000e+00> : vector<16xf32>
    %31 = vector.multi_reduction <add>, %30, %cst_19 [1] : vector<16x16xf32> to vector<16xf32>
    %32 = vector.shape_cast %31 : vector<16xf32> to vector<16x1xf32>
    %33 = tpu.reciprocal %32 {approx = true} : vector<16x1xf32> -> vector<16x1xf32>
    %34 = vector.broadcast %33 : vector<16x1xf32> to vector<16x16xf32>
    %35 = arith.mulf %30, %34 : vector<16x16xf32>
    %cst_20 = arith.constant dense<0.000000e+00> : vector<16x8xf32>
    %36 = tpu.matmul %35, %6, %cst_20 {dimension_numbers = #tpu.dot_dimension_numbers<[1], [0], [0], [1], [0, 0, 1, 1], [], []>} : vector<16x16xf32>, vector<16x8xf32>, vector<16x8xf32> -> vector<16x8xf32>
    %cst_21 = arith.constant 0.000000e+00 : f32
    %37 = vector.broadcast %cst_21 : f32 to vector<16x8xf32>
    %38 = arith.cmpf ogt, %36, %37 : vector<16x8xf32>
    %cst_22 = arith.constant 0.000000e+00 : f32
    %39 = vector.broadcast %cst_22 : f32 to vector<16x8xf32>
    %40 = arith.minimumf %36, %39 : vector<16x8xf32>
    %41 = math.exp %40 : vector<16x8xf32>
    %cst_23 = arith.constant 1.000000e+00 : f32
    %42 = vector.broadcast %cst_23 : f32 to vector<16x8xf32>
    %43 = arith.subf %41, %42 : vector<16x8xf32>
    %44 = arith.select %38, %36, %43 : vector<16x8xi1>, vector<16x8xf32>
    %c0_24 = arith.constant 0 : index
    %c0_25 = arith.constant 0 : index
    %c0_26 = arith.constant 0 : index
    %45 = vector.load %arg5[%c0_24, %c0_25, %c0_26] : memref<2x8x16xf32, #tpu.memory_space<vmem>>, vector<1x8x16xf32>
    %46 = vector.shape_cast %45 : vector<1x8x16xf32> to vector<8x16xf32>
    %cst_27 = arith.constant dense<0.000000e+00> : vector<16x16xf32>
    %47 = tpu.matmul %44, %46, %cst_27 {dimension_numbers = #tpu.dot_dimension_numbers<[1], [0], [0], [1], [0, 0, 1, 1], [], []>} : vector<16x8xf32>, vector<8x16xf32>, vector<16x16xf32> -> vector<16x16xf32>
    %c1 = arith.constant 1 : index
    %c0_28 = arith.constant 0 : index
    %c0_29 = arith.constant 0 : index
    %48 = vector.load %arg2[%c1, %c0_28, %c0_29] : memref<2x16x8xf32, #tpu.memory_space<vmem>>, vector<1x16x8xf32>
    %49 = vector.shape_cast %48 : vector<1x16x8xf32> to vector<16x8xf32>
    %cst_30 = arith.constant dense<0.000000e+00> : vector<16x8xf32>
    %50 = tpu.matmul %0, %49, %cst_30 {dimension_numbers = #tpu.dot_dimension_numbers<[1], [0], [0], [1], [0, 0, 1, 1], [], []>} : vector<16x16xf32>, vector<16x8xf32>, vector<16x8xf32> -> vector<16x8xf32>
    %c1_31 = arith.constant 1 : index
    %c0_32 = arith.constant 0 : index
    %c0_33 = arith.constant 0 : index
    %51 = vector.load %arg3[%c1_31, %c0_32, %c0_33] : memref<2x1x8xf32, #tpu.memory_space<vmem>>, vector<1x1x8xf32>
    %52 = vector.shape_cast %51 : vector<1x1x8xf32> to vector<1x8xf32>
    %c1_34 = arith.constant 1 : index
    %c0_35 = arith.constant 0 : index
    %c0_36 = arith.constant 0 : index
    %53 = vector.load %arg4[%c1_34, %c0_35, %c0_36] : memref<2x1x8xf32, #tpu.memory_space<vmem>>, vector<1x1x8xf32>
    %54 = vector.shape_cast %53 : vector<1x1x8xf32> to vector<1x8xf32>
    %55 = vector.broadcast %52 : vector<1x8xf32> to vector<16x8xf32>
    %56 = arith.mulf %50, %55 : vector<16x8xf32>
    %cst_37 = arith.constant dense<0.000000e+00> : vector<16xf32>
    %57 = vector.multi_reduction <add>, %56, %cst_37 [1] : vector<16x8xf32> to vector<16xf32>
    %58 = vector.shape_cast %57 : vector<16xf32> to vector<16x1xf32>
    %cst_38 = arith.constant dense<0.000000e+00> : vector<1x16xf32>
    %59 = tpu.matmul %54, %50, %cst_38 {dimension_numbers = #tpu.dot_dimension_numbers<[1], [1], [0], [0], [0, 0, 1, 0], [], []>} : vector<1x8xf32>, vector<16x8xf32>, vector<1x16xf32> -> vector<1x16xf32>
    %60 = vector.broadcast %58 : vector<16x1xf32> to vector<16x16xf32>
    %61 = vector.broadcast %59 : vector<1x16xf32> to vector<16x16xf32>
    %62 = arith.addf %60, %61 : vector<16x16xf32>
    %cst_39 = arith.constant 0.000000e+00 : f32
    %63 = vector.broadcast %cst_39 : f32 to vector<16x16xf32>
    %64 = arith.cmpf ogt, %62, %63 : vector<16x16xf32>
    %cst_40 = arith.constant 2.000000e-01 : f32
    %65 = vector.broadcast %cst_40 : f32 to vector<16x16xf32>
    %66 = arith.mulf %65, %62 : vector<16x16xf32>
    %67 = arith.select %64, %62, %66 : vector<16x16xi1>, vector<16x16xf32>
    %cst_41 = arith.constant -9.000000e+15 : f32
    %68 = vector.broadcast %cst_41 : f32 to vector<16x16xf32>
    %69 = arith.select %3, %67, %68 : vector<16x16xi1>, vector<16x16xf32>
    %cst_42 = arith.constant dense<0xFF800000> : vector<16xf32>
    %70 = vector.multi_reduction <maximumf>, %69, %cst_42 [1] : vector<16x16xf32> to vector<16xf32>
    %71 = vector.shape_cast %70 : vector<16xf32> to vector<16x1xf32>
    %72 = vector.broadcast %71 : vector<16x1xf32> to vector<16x16xf32>
    %73 = arith.subf %69, %72 : vector<16x16xf32>
    %74 = math.exp %73 : vector<16x16xf32>
    %cst_43 = arith.constant dense<0.000000e+00> : vector<16xf32>
    %75 = vector.multi_reduction <add>, %74, %cst_43 [1] : vector<16x16xf32> to vector<16xf32>
    %76 = vector.shape_cast %75 : vector<16xf32> to vector<16x1xf32>
    %77 = tpu.reciprocal %76 {approx = true} : vector<16x1xf32> -> vector<16x1xf32>
    %78 = vector.broadcast %77 : vector<16x1xf32> to vector<16x16xf32>
    %79 = arith.mulf %74, %78 : vector<16x16xf32>
    %cst_44 = arith.constant dense<0.000000e+00> : vector<16x8xf32>
    %80 = tpu.matmul %79, %50, %cst_44 {dimension_numbers = #tpu.dot_dimension_numbers<[1], [0], [0], [1], [0, 0, 1, 1], [], []>} : vector<16x16xf32>, vector<16x8xf32>, vector<16x8xf32> -> vector<16x8xf32>
    %cst_45 = arith.constant 0.000000e+00 : f32
    %81 = vector.broadcast %cst_45 : f32 to vector<16x8xf32>
    %82 = arith.cmpf ogt, %80, %81 : vector<16x8xf32>
    %cst_46 = arith.constant 0.000000e+00 : f32
    %83 = vector.broadcast %cst_46 : f32 to vector<16x8xf32>
    %84 = arith.minimumf %80, %83 : vector<16x8xf32>
    %85 = math.exp %84 : vector<16x8xf32>
    %cst_47 = arith.constant 1.000000e+00 : f32
    %86 = vector.broadcast %cst_47 : f32 to vector<16x8xf32>
    %87 = arith.subf %85, %86 : vector<16x8xf32>
    %88 = arith.select %82, %80, %87 : vector<16x8xi1>, vector<16x8xf32>
    %c1_48 = arith.constant 1 : index
    %c0_49 = arith.constant 0 : index
    %c0_50 = arith.constant 0 : index
    %89 = vector.load %arg5[%c1_48, %c0_49, %c0_50] : memref<2x8x16xf32, #tpu.memory_space<vmem>>, vector<1x8x16xf32>
    %90 = vector.shape_cast %89 : vector<1x8x16xf32> to vector<8x16xf32>
    %cst_51 = arith.constant dense<0.000000e+00> : vector<16x16xf32>
    %91 = tpu.matmul %88, %90, %cst_51 {dimension_numbers = #tpu.dot_dimension_numbers<[1], [0], [0], [1], [0, 0, 1, 1], [], []>} : vector<16x8xf32>, vector<8x16xf32>, vector<16x16xf32> -> vector<16x16xf32>
    %92 = arith.addf %47, %91 : vector<16x16xf32>
    %c0_52 = arith.constant 0 : index
    %c0_53 = arith.constant 0 : index
    %93 = vector.load %arg6[%c0_52, %c0_53] : memref<1x16xf32, #tpu.memory_space<vmem>>, vector<1x16xf32>
    %c0_54 = arith.constant 0 : index
    %c0_55 = arith.constant 0 : index
    %94 = vector.load %arg7[%c0_54, %c0_55] : memref<1x16xf32, #tpu.memory_space<vmem>>, vector<1x16xf32>
    %95 = vector.broadcast %93 : vector<1x16xf32> to vector<16x16xf32>
    %96 = arith.mulf %92, %95 : vector<16x16xf32>
    %cst_56 = arith.constant dense<0.000000e+00> : vector<16xf32>
    %97 = vector.multi_reduction <add>, %96, %cst_56 [1] : vector<16x16xf32> to vector<16xf32>
    %98 = vector.shape_cast %97 : vector<16xf32> to vector<16x1xf32>
    %cst_57 = arith.constant dense<0.000000e+00> : vector<1x16xf32>
    %99 = tpu.matmul %94, %92, %cst_57 {dimension_numbers = #tpu.dot_dimension_numbers<[1], [1], [0], [0], [0, 0, 1, 0], [], []>} : vector<1x16xf32>, vector<16x16xf32>, vector<1x16xf32> -> vector<1x16xf32>
    %100 = vector.broadcast %98 : vector<16x1xf32> to vector<16x16xf32>
    %101 = vector.broadcast %99 : vector<1x16xf32> to vector<16x16xf32>
    %102 = arith.addf %100, %101 : vector<16x16xf32>
    %cst_58 = arith.constant 0.000000e+00 : f32
    %103 = vector.broadcast %cst_58 : f32 to vector<16x16xf32>
    %104 = arith.cmpf ogt, %102, %103 : vector<16x16xf32>
    %cst_59 = arith.constant 2.000000e-01 : f32
    %105 = vector.broadcast %cst_59 : f32 to vector<16x16xf32>
    %106 = arith.mulf %105, %102 : vector<16x16xf32>
    %107 = arith.select %104, %102, %106 : vector<16x16xi1>, vector<16x16xf32>
    %cst_60 = arith.constant -9.000000e+15 : f32
    %108 = vector.broadcast %cst_60 : f32 to vector<16x16xf32>
    %109 = arith.select %3, %107, %108 : vector<16x16xi1>, vector<16x16xf32>
    %cst_61 = arith.constant dense<0xFF800000> : vector<16xf32>
    %110 = vector.multi_reduction <maximumf>, %109, %cst_61 [1] : vector<16x16xf32> to vector<16xf32>
    %111 = vector.shape_cast %110 : vector<16xf32> to vector<16x1xf32>
    %112 = vector.broadcast %111 : vector<16x1xf32> to vector<16x16xf32>
    %113 = arith.subf %109, %112 : vector<16x16xf32>
    %114 = math.exp %113 : vector<16x16xf32>
    %cst_62 = arith.constant dense<0.000000e+00> : vector<16xf32>
    %115 = vector.multi_reduction <add>, %114, %cst_62 [1] : vector<16x16xf32> to vector<16xf32>
    %116 = vector.shape_cast %115 : vector<16xf32> to vector<16x1xf32>
    %117 = tpu.reciprocal %116 {approx = true} : vector<16x1xf32> -> vector<16x1xf32>
    %118 = vector.broadcast %117 : vector<16x1xf32> to vector<16x16xf32>
    %119 = arith.mulf %114, %118 : vector<16x16xf32>
    %cst_63 = arith.constant dense<0.000000e+00> : vector<16x16xf32>
    %120 = tpu.matmul %119, %92, %cst_63 {dimension_numbers = #tpu.dot_dimension_numbers<[1], [0], [0], [1], [0, 0, 1, 1], [], []>} : vector<16x16xf32>, vector<16x16xf32>, vector<16x16xf32> -> vector<16x16xf32>
    %cst_64 = arith.constant dense<0.000000e+00> : vector<16xf32>
    %121 = vector.multi_reduction <add>, %120, %cst_64 [0] : vector<16x16xf32> to vector<16xf32>
    %122 = vector.shape_cast %121 : vector<16xf32> to vector<1x16xf32>
    %cst_65 = arith.constant 1.600000e+01 : f32
    %123 = vector.broadcast %cst_65 : f32 to vector<1x16xf32>
    %124 = arith.divf %122, %123 : vector<1x16xf32>
    %c0_66 = arith.constant 0 : index
    %c0_67 = arith.constant 0 : index
    %c0_68 = arith.constant 0 : index
    %125 = vector.load %arg8[%c0_66, %c0_67, %c0_68] : memref<2x16x16xf32, #tpu.memory_space<vmem>>, vector<1x16x16xf32>
    %126 = vector.shape_cast %125 : vector<1x16x16xf32> to vector<16x16xf32>
    %cst_69 = arith.constant dense<0.000000e+00> : vector<1x16xf32>
    %127 = tpu.matmul %124, %126, %cst_69 {dimension_numbers = #tpu.dot_dimension_numbers<[1], [0], [0], [1], [0, 0, 1, 1], [], []>} : vector<1x16xf32>, vector<16x16xf32>, vector<1x16xf32> -> vector<1x16xf32>
    %c0_70 = arith.constant 0 : index
    %c0_71 = arith.constant 0 : index
    %c0_72 = arith.constant 0 : index
    %128 = vector.load %arg9[%c0_70, %c0_71, %c0_72] : memref<2x1x16xf32, #tpu.memory_space<vmem>>, vector<1x1x16xf32>
    %129 = vector.shape_cast %128 : vector<1x1x16xf32> to vector<1x16xf32>
    %130 = arith.addf %127, %129 : vector<1x16xf32>
    %cst_73 = arith.constant 0.000000e+00 : f32
    %131 = vector.broadcast %cst_73 : f32 to vector<1x16xf32>
    %132 = arith.maximumf %130, %131 : vector<1x16xf32>
    %c1_74 = arith.constant 1 : index
    %c0_75 = arith.constant 0 : index
    %c0_76 = arith.constant 0 : index
    %133 = vector.load %arg8[%c1_74, %c0_75, %c0_76] : memref<2x16x16xf32, #tpu.memory_space<vmem>>, vector<1x16x16xf32>
    %134 = vector.shape_cast %133 : vector<1x16x16xf32> to vector<16x16xf32>
    %cst_77 = arith.constant dense<0.000000e+00> : vector<1x16xf32>
    %135 = tpu.matmul %132, %134, %cst_77 {dimension_numbers = #tpu.dot_dimension_numbers<[1], [0], [0], [1], [0, 0, 1, 1], [], []>} : vector<1x16xf32>, vector<16x16xf32>, vector<1x16xf32> -> vector<1x16xf32>
    %c1_78 = arith.constant 1 : index
    %c0_79 = arith.constant 0 : index
    %c0_80 = arith.constant 0 : index
    %136 = vector.load %arg9[%c1_78, %c0_79, %c0_80] : memref<2x1x16xf32, #tpu.memory_space<vmem>>, vector<1x1x16xf32>
    %137 = vector.shape_cast %136 : vector<1x1x16xf32> to vector<1x16xf32>
    %138 = arith.addf %135, %137 : vector<1x16xf32>
    %cst_81 = arith.constant 0.000000e+00 : f32
    %139 = vector.broadcast %cst_81 : f32 to vector<1x16xf32>
    %140 = arith.maximumf %138, %139 : vector<1x16xf32>
    %c0_82 = arith.constant 0 : index
    %c0_83 = arith.constant 0 : index
    %141 = vector.load %arg10[%c0_82, %c0_83] : memref<16x128xf32, #tpu.memory_space<vmem>>, vector<16x128xf32>
    %cst_84 = arith.constant dense<0.000000e+00> : vector<1x128xf32>
    %142 = tpu.matmul %140, %141, %cst_84 {dimension_numbers = #tpu.dot_dimension_numbers<[1], [0], [0], [1], [0, 0, 1, 1], [], []>} : vector<1x16xf32>, vector<16x128xf32>, vector<1x128xf32> -> vector<1x128xf32>
    %c0_85 = arith.constant 0 : index
    %c0_86 = arith.constant 0 : index
    %143 = vector.load %arg11[%c0_85, %c0_86] : memref<1x128xf32, #tpu.memory_space<vmem>>, vector<1x128xf32>
    %144 = arith.addf %142, %143 : vector<1x128xf32>
    %145 = tpu.iota {dimensions = array<i32: 1>} : vector<1x128xi32>
    %c4_i32 = arith.constant 4 : i32
    %146 = vector.broadcast %c4_i32 : i32 to vector<1x128xi32>
    %147 = arith.cmpi slt, %145, %146 : vector<1x128xi32>
    %cst_87 = arith.constant -9.000000e+15 : f32
    %148 = vector.broadcast %cst_87 : f32 to vector<1x128xf32>
    %149 = arith.select %147, %144, %148 : vector<1x128xi1>, vector<1x128xf32>
    %cst_88 = arith.constant dense<0xFF800000> : vector<1xf32>
    %150 = vector.multi_reduction <maximumf>, %149, %cst_88 [1] : vector<1x128xf32> to vector<1xf32>
    %151 = vector.shape_cast %150 : vector<1xf32> to vector<1x1xf32>
    %152 = vector.broadcast %151 : vector<1x1xf32> to vector<1x128xf32>
    %153 = arith.subf %149, %152 : vector<1x128xf32>
    %154 = math.exp %153 : vector<1x128xf32>
    %cst_89 = arith.constant dense<0.000000e+00> : vector<1xf32>
    %155 = vector.multi_reduction <add>, %154, %cst_89 [1] : vector<1x128xf32> to vector<1xf32>
    %156 = vector.shape_cast %155 : vector<1xf32> to vector<1x1xf32>
    %157 = tpu.reciprocal %156 {approx = true} : vector<1x1xf32> -> vector<1x1xf32>
    %158 = vector.broadcast %157 : vector<1x1xf32> to vector<1x128xf32>
    %159 = arith.mulf %154, %158 : vector<1x128xf32>
    %160 = vector.shape_cast %159 : vector<1x128xf32> to vector<1x128xf32>
    %161 = vector.broadcast %160 : vector<1x128xf32> to vector<8x128xf32>
    %c0_90 = arith.constant 0 : index
    %c0_91 = arith.constant 0 : index
    %162 = vector.load %arg12[%c0_90, %c0_91] : memref<8x128xf32, #tpu.memory_space<vmem>>, vector<8x128xf32>
    tpu.vector_store %arg12[%c0_90, %c0_91], %161 {strides = array<i32>} : memref<8x128xf32, #tpu.memory_space<vmem>>, vector<8x128xf32>,
    return
  }
}

</mosaic_0001>

<llo_original>
// kernel: tpu_custom_call.1
$region0: #{tpu_custom_call.1}
  #allocation0 [shape = 'u32[]', space=smem, size = 0x4, offset = 0x4, fixed_abs, tag = 'smem constant byte address 0x4 - core index']
  #allocation1 [shape = 'u32[144,128]{1,0:T(1,128)}', space=vmem, size = 0x12000, scoped, tag = 'internal scratch']
  %s0 = inlined_call_operand.vmem [shape: f32[16,16], index: 0, kind: input, shape index: {}]
  %s1 = inlined_call_operand.hbm [shape: f32[16,16], index: 1, kind: input, shape index: {}]
  %s2 = inlined_call_operand.vmem [shape: f32[2,16,8], index: 2, kind: input, shape index: {}]
  %s3 = inlined_call_operand.vmem [shape: f32[2,1,8], index: 3, kind: input, shape index: {}]
  %s4 = inlined_call_operand.hbm [shape: f32[2,1,8], index: 4, kind: input, shape index: {}]
  %s5 = inlined_call_operand.vmem [shape: f32[2,8,16], index: 5, kind: input, shape index: {}]
  %s6 = inlined_call_operand.hbm [shape: f32[1,16], index: 6, kind: input, shape index: {}]
  %s7 = inlined_call_operand.hbm [shape: f32[1,16], index: 7, kind: input, shape index: {}]
  %s8 = inlined_call_operand.vmem [shape: f32[2,16,16], index: 8, kind: input, shape index: {}]
  %s9 = inlined_call_operand.hbm [shape: f32[2,1,16], index: 9, kind: input, shape index: {}]
  %s10 = inlined_call_operand.vmem [shape: f32[16,128], index: 10, kind: input, shape index: {}]
  %s11 = inlined_call_operand.vmem [shape: f32[1,128], index: 11, kind: input, shape index: {}]
  %s12 = inlined_call_operand.hbm [shape: f32[8,128], index: 12, kind: output, shape index: {}]
  %s13 = sld [smem:[#allocation0]]
  $region78: #{tpu_custom_call.1} parent=0
    _
  %s15 = ssub.s32 1, %s13
  %s16 = scalar_select 0, %s15, %s13
  $region1: #{tpu_custom_call.1} parent=0
    #allocation2 [shape = 'u8[8192]{0}', space=vmem, size = 0x2000, scoped, tag = 'input window, operand 1, single buffered']
    #allocation3 [shape = 's32[1]{0}', space=sflag, size = 0x4, scoped, tag = 'scoped memory for tpu_custom_call.1']
    #allocation4 [shape = 's32[1]{0}', space=sflag, size = 0x4, scoped, tag = 'scoped memory for tpu_custom_call.1']
    #allocation5 [shape = 'u8[1024]{0}', space=vmem, size = 0x400, scoped, tag = 'input window, operand 4, single buffered']
    #allocation6 [shape = 's32[1]{0}', space=sflag, size = 0x4, scoped, tag = 'scoped memory for tpu_custom_call.1']
    #allocation7 [shape = 'u8[512]{0}', space=vmem, size = 0x400, scoped, tag = 'input window, operand 6, single buffered']
    #allocation8 [shape = 'u8[512]{0}', space=vmem, size = 0x400, scoped, tag = 'input window, operand 7, single buffered']
    #allocation9 [shape = 's32[1]{0}', space=sflag, size = 0x4, scoped, tag = 'scoped memory for tpu_custom_call.1']
    #allocation10 [shape = 'u8[1024]{0}', space=vmem, size = 0x400, scoped, tag = 'input window, operand 9, single buffered']
    #allocation11 [shape = 'u8[4096]{0}', space=vmem, size = 0x1000, scoped, tag = 'output window, operand 0, single buffered']
    %17 = vsyncpa [#allocation3], 0
    %18 = vsyncpa [#allocation6], 0
    %19 = vsyncpa [#allocation9], 0
    %20 = vsyncpa [#allocation4], 0
    // Predicated region
    $region2: #{tpu_custom_call.1} parent=1 // pred_check
      _
    $region3: #{tpu_custom_call.1} parent=1 // pred_check_branch
      %22 = sbr.rel (0) target = $region5
    $region4: #{tpu_custom_call.1} parent=1 // pred_region
      _
    $region5: #{tpu_custom_call.1} parent=1 // pred_fallthru
      _
    // Predicated region
    $region6: #{tpu_custom_call.1} parent=1 // pred_check
      _
    $region7: #{tpu_custom_call.1} parent=1 // pred_check_branch
      %24 = sbr.rel (0) target = $region9
    $region8: #{tpu_custom_call.1} parent=1 // pred_region
      %s26 = ssub.s32 256, 256
      %27 = vsyncadd [#allocation3], %s26
      %s28 = sshll.u32 [#allocation2], 4
      %s29 = int_to_ptr.vmem [resolvable:$true] %s28
      %34 = dma.hbm_to_vmem [thread:$0]  %s1, 256, %s29, [#allocation3], 128, 128, 8
    $region9: #{tpu_custom_call.1} parent=1 // pred_fallthru
      _
    // Predicated region
    $region10: #{tpu_custom_call.1} parent=1 // pred_check
      _
    $region11: #{tpu_custom_call.1} parent=1 // pred_check_branch
      %36 = sbr.rel (0) target = $region13
    $region12: #{tpu_custom_call.1} parent=1 // pred_region
      _
    $region13: #{tpu_custom_call.1} parent=1 // pred_fallthru
      _
    // Predicated region
    $region14: #{tpu_custom_call.1} parent=1 // pred_check
      _
    $region15: #{tpu_custom_call.1} parent=1 // pred_check_branch
      %38 = sbr.rel (0) target = $region17
    $region16: #{tpu_custom_call.1} parent=1 // pred_region
      _
    $region17: #{tpu_custom_call.1} parent=1 // pred_fallthru
      _
    // Predicated region
    $region18: #{tpu_custom_call.1} parent=1 // pred_check
      _
    $region19: #{tpu_custom_call.1} parent=1 // pred_check_branch
      %40 = sbr.rel (0) target = $region21
    $region20: #{tpu_custom_call.1} parent=1 // pred_region
      %s42 = ssub.s32 32, 32
      %43 = vsyncadd [#allocation6], %s42
      %s44 = sshll.u32 [#allocation5], 4
      %s45 = int_to_ptr.vmem [resolvable:$true] %s44
      %50 = dma.hbm_to_vmem [thread:$0]  %s4, 32, %s45, [#allocation6], 16, 16, 1
    $region21: #{tpu_custom_call.1} parent=1 // pred_fallthru
      _
    // Predicated region
    $region22: #{tpu_custom_call.1} parent=1 // pred_check
      _
    $region23: #{tpu_custom_call.1} parent=1 // pred_check_branch
      %52 = sbr.rel (0) target = $region25
    $region24: #{tpu_custom_call.1} parent=1 // pred_region
      _
    $region25: #{tpu_custom_call.1} parent=1 // pred_fallthru
      _
    // Predicated region
    $region26: #{tpu_custom_call.1} parent=1 // pred_check
      _
    $region27: #{tpu_custom_call.1} parent=1 // pred_check_branch
      %54 = sbr.rel (0) target = $region29
    $region28: #{tpu_custom_call.1} parent=1 // pred_region
      %s56 = ssub.s32 16, 16
      %57 = vsyncadd [#allocation6], %s56
      %s59 = sshll.u32 [#allocation7], 4
      %s60 = int_to_ptr.vmem [resolvable:$true] %s59
      %62 = dma.hbm_to_vmem [thread:$0]  %s6, 16, %s60, [#allocation6]
    $region29: #{tpu_custom_call.1} parent=1 // pred_fallthru
      _
    // Predicated region
    $region30: #{tpu_custom_call.1} parent=1 // pred_check
      _
    $region31: #{tpu_custom_call.1} parent=1 // pred_check_branch
      %64 = sbr.rel (0) target = $region33
    $region32: #{tpu_custom_call.1} parent=1 // pred_region
      %s66 = ssub.s32 16, 16
      %67 = vsyncadd [#allocation9], %s66
      %s69 = sshll.u32 [#allocation8], 4
      %s70 = int_to_ptr.vmem [resolvable:$true] %s69
      %72 = dma.hbm_to_vmem [thread:$0]  %s7, 16, %s70, [#allocation9]
    $region33: #{tpu_custom_call.1} parent=1 // pred_fallthru
      _
    // Predicated region
    $region34: #{tpu_custom_call.1} parent=1 // pred_check
      _
    $region35: #{tpu_custom_call.1} parent=1 // pred_check_branch
      %74 = sbr.rel (0) target = $region37
    $region36: #{tpu_custom_call.1} parent=1 // pred_region
      _
    $region37: #{tpu_custom_call.1} parent=1 // pred_fallthru
      _
    // Predicated region
    $region38: #{tpu_custom_call.1} parent=1 // pred_check
      _
    $region39: #{tpu_custom_call.1} parent=1 // pred_check_branch
      %76 = sbr.rel (0) target = $region41
    $region40: #{tpu_custom_call.1} parent=1 // pred_region
      %s78 = ssub.s32 32, 32
      %79 = vsyncadd [#allocation9], %s78
      %s80 = sshll.u32 [#allocation10], 4
      %s81 = int_to_ptr.vmem [resolvable:$true] %s80
      %86 = dma.hbm_to_vmem [thread:$0]  %s9, 32, %s81, [#allocation9], 16, 16, 1
    $region41: #{tpu_custom_call.1} parent=1 // pred_fallthru
      _
    // Predicated region
    $region42: #{tpu_custom_call.1} parent=1 // pred_check
      _
    $region43: #{tpu_custom_call.1} parent=1 // pred_check_branch
      %88 = sbr.rel (0) target = $region45
    $region44: #{tpu_custom_call.1} parent=1 // pred_region
      _
    $region45: #{tpu_custom_call.1} parent=1 // pred_fallthru
      _
    // Predicated region
    $region46: #{tpu_custom_call.1} parent=1 // pred_check
      _
    $region47: #{tpu_custom_call.1} parent=1 // pred_check_branch
      %90 = sbr.rel (0) target = $region49
    $region48: #{tpu_custom_call.1} parent=1 // pred_region
      _
    $region49: #{tpu_custom_call.1} parent=1 // pred_fallthru
      _
    // Predicated region
    $region50: #{tpu_custom_call.1} parent=1 // pred_check
      _
    $region51: #{tpu_custom_call.1} parent=1 // pred_check_branch
      %92 = sbr.rel (0) target = $region53
    $region52: #{tpu_custom_call.1} parent=1 // pred_region
      %93 = dma.done [#allocation3], 256
    $region53: #{tpu_custom_call.1} parent=1 // pred_fallthru
      _
    // Predicated region
    $region54: #{tpu_custom_call.1} parent=1 // pred_check
      _
    $region55: #{tpu_custom_call.1} parent=1 // pred_check_branch
      %95 = sbr.rel (0) target = $region57
    $region56: #{tpu_custom_call.1} parent=1 // pred_region
      %96 = dma.done [#allocation6], 32
    $region57: #{tpu_custom_call.1} parent=1 // pred_fallthru
      _
    // Predicated region
    $region58: #{tpu_custom_call.1} parent=1 // pred_check
      _
    $region59: #{tpu_custom_call.1} parent=1 // pred_check_branch
      %98 = sbr.rel (0) target = $region61
    $region60: #{tpu_custom_call.1} parent=1 // pred_region
      %99 = dma.done [#allocation6], 16
    $region61: #{tpu_custom_call.1} parent=1 // pred_fallthru
      _
    // Predicated region
    $region62: #{tpu_custom_call.1} parent=1 // pred_check
      _
    $region63: #{tpu_custom_call.1} parent=1 // pred_check_branch
      %101 = sbr.rel (0) target = $region65
    $region64: #{tpu_custom_call.1} parent=1 // pred_region
      %102 = dma.done [#allocation9], 16
    $region65: #{tpu_custom_call.1} parent=1 // pred_fallthru
      _
    // Predicated region
    $region66: #{tpu_custom_call.1} parent=1 // pred_check
      _
    $region67: #{tpu_custom_call.1} parent=1 // pred_check_branch
      %104 = sbr.rel (0) target = $region69
    $region68: #{tpu_custom_call.1} parent=1 // pred_region
      %105 = dma.done [#allocation9], 32
    $region69: #{tpu_custom_call.1} parent=1 // pred_fallthru
      _
    %v106 = vld [vmem:[%s0] sm:$0xff]
    %v107 = vld [vmem:[%s0 + $0x8] sm:$0xff]
    %v108 = vld [vmem:[#allocation2] sm:$0xff]
    %v109 = vld [vmem:[#allocation2 + $0x8] sm:$0xff]
    %vm110 = vcmp.gt.f32.partialorder %v108, 0.0
    %vm111 = vcmp.gt.f32.partialorder %v109, 0.0
    %v112 = vld [vmem:[%s2] sm:$0xff]
    %v113 = vld [vmem:[%s2 + $0x8] sm:$0xff]
    %vm114 = vcmask 130048
    %v116 = vsel %vm114, %v106, 0
    %v119 = vsel %vm114, %v107, 0
    %121 = vmatprep.subr.mxu0 0.0
    %122 = vmatpush1.msra.mxu0 %v112
    %123 = vmatprep.subr.mxu0 0.0
    %124 = vmatpush1.msra.mxu0 %v113
    %125 = vmatprep.subr.mxu0 0.0
    %126 = vmatpush1.msra.mxu0 0.0
    %127 = vmatprep.subr.mxu0 0.0
    %128 = vmatpush1.msra.mxu0 0.0
    %129 = vmatprep.subr.mxu0 0.0
    %130 = vmatpush1.msra.mxu0 0.0
    %131 = vmatprep.subr.mxu0 0.0
    %132 = vmatpush1.msra.mxu0 0.0
    %133 = vmatprep.subr.mxu0 0.0
    %134 = vmatpush1.msra.mxu0 0.0
    %135 = vmatprep.subr.mxu0 0.0
    %136 = vmatpush1.msra.mxu0 0.0
    %137 = vmatprep.subr.mxu0 0.0
    %138 = vmatpush1.msra.mxu0 0.0
    %139 = vmatprep.subr.mxu0 0.0
    %140 = vmatpush1.msra.mxu0 0.0
    %141 = vmatprep.subr.mxu0 0.0
    %142 = vmatpush1.msra.mxu0 0.0
    %143 = vmatprep.subr.mxu0 0.0
    %144 = vmatpush1.msra.mxu0 0.0
    %145 = vmatprep.subr.mxu0 0.0
    %146 = vmatpush1.msra.mxu0 0.0
    %147 = vmatprep.subr.mxu0 0.0
    %148 = vmatpush1.msra.mxu0 0.0
    %149 = vmatprep.subr.mxu0 0.0
    %150 = vmatpush1.msra.mxu0 0.0
    %151 = vmatprep.subr.mxu0 0.0
    %152 = vmatpush1.msra.mxu0 0.0
    %153 = vmatprep.subr.mxu0 0.0
    %154 = vmatpush1.msra.mxu0 0.0
    %155 = vmatprep.subr.mxu0 0.0
    %156 = vmatpush1.msra.mxu0 0.0
    %157 = vmatprep.subr.mxu0 0.0
    %158 = vmatpush1.msra.mxu0 0.0
    %159 = vmatprep.subr.mxu0 0.0
    %160 = vmatpush1.msra.mxu0 0.0
    %161 = vmatprep.subr.mxu0 0.0
    %162 = vmatpush1.msra.mxu0 0.0
    %163 = vmatprep.subr.mxu0 0.0
    %164 = vmatpush1.msra.mxu0 0.0
    %165 = vmatprep.subr.mxu0 0.0
    %166 = vmatpush1.msra.mxu0 0.0
    %167 = vmatprep.subr.mxu0 0.0
    %168 = vmatpush1.msra.mxu0 0.0
    %169 = vmatprep.subr.mxu0 0.0
    %170 = vmatpush1.msra.mxu0 0.0
    %171 = vmatprep.subr.mxu0 0.0
    %172 = vmatpush1.msra.mxu0 0.0
    %173 = vmatprep.subr.mxu0 0.0
    %174 = vmatpush1.msra.mxu0 0.0
    %175 = vmatprep.subr.mxu0 0.0
    %176 = vmatpush1.msra.mxu0 0.0
    %177 = vmatprep.subr.mxu0 0.0
    %178 = vmatpush1.msra.mxu0 0.0
    %179 = vmatprep.subr.mxu0 0.0
    %180 = vmatpush1.msra.mxu0 0.0
    %181 = vmatprep.subr.mxu0 0.0
    %182 = vmatpush1.msra.mxu0 0.0
    %183 = vmatprep.subr.mxu0 0.0
    %184 = vmatpush1.msra.mxu0 0.0
    %185 = vmatprep.mubr.f32.mxu0 0.0
    %186 = vmatmul.mubr.f32.gmra.mrb[0].mxu0 %v116
    %v187 = vpop.f32.mrb[0].mxu0
    %v188 = vadd.f32 0.0, %v187
    %v189 = vpop.f32.mrb[0].mxu0
    %190 = vmatprep.mubr.f32.mxu0 0.0
    %191 = vmatmul.mubr.f32.gmra.mrb[0].mxu0 %v119
    %v192 = vpop.f32.mrb[0].mxu0
    %v193 = vadd.f32 0.0, %v192
    %v194 = vpop.f32.mrb[0].mxu0
    %195 = vdwg.mxu0
    %v196 = vld [vmem:[%s3] sm:$0x1]
    %v197 = vld [vmem:[#allocation5] sm:$0x1]
    %v199 = vlaneseq
    %v200 = vshrl.u32 %v199, 7
    %v201 = vsub.s32 0, %v200
    %v202 = vrot.slane %v196, %v201
    %v204 = vmul.f32 %v188, %v202
    %v205 = vmul.f32 %v193, %v202
    %vm206 = vcmask 64512
    %v207 = vsel %vm206, %v204, 0.0
    %208 = vadd.xlane.f32.xlu0 %v207
    %v209 = vpop.xlane.xlu0 %208
    %v210 = vsel %vm206, %v205, 0.0
    %211 = vadd.xlane.f32.xlu0 %v210
    %v212 = vpop.xlane.xlu0 %211
    %v214 = vsel %vm206, %v197, 0
    %v217 = vsel %vm206, %v188, 0
    %v220 = vsel %vm206, %v193, 0
    %222 = vmatprep.subr.mxu0 0.0
    %223 = vmatpush1.xpose.msra.mxu0 %v217
    %224 = vmatprep.subr.mxu0 0.0
    %225 = vmatpush1.xpose.msra.mxu0 %v220
    %226 = vmatprep.subr.mxu0 0.0
    %227 = vmatpush1.xpose.msra.mxu0 0.0
    %228 = vmatprep.subr.mxu0 0.0
    %229 = vmatpush1.xpose.msra.mxu0 0.0
    %230 = vmatprep.subr.mxu0 0.0
    %231 = vmatpush1.xpose.msra.mxu0 0.0
    %232 = vmatprep.subr.mxu0 0.0
    %233 = vmatpush1.xpose.msra.mxu0 0.0
    %234 = vmatprep.subr.mxu0 0.0
    %235 = vmatpush1.xpose.msra.mxu0 0.0
    %236 = vmatprep.subr.mxu0 0.0
    %237 = vmatpush1.xpose.msra.mxu0 0.0
    %238 = vmatprep.subr.mxu0 0.0
    %239 = vmatpush1.xpose.msra.mxu0 0.0
    %240 = vmatprep.subr.mxu0 0.0
    %241 = vmatpush1.xpose.msra.mxu0 0.0
    %242 = vmatprep.subr.mxu0 0.0
    %243 = vmatpush1.xpose.msra.mxu0 0.0
    %244 = vmatprep.subr.mxu0 0.0
    %245 = vmatpush1.xpose.msra.mxu0 0.0
    %246 = vmatprep.subr.mxu0 0.0
    %247 = vmatpush1.xpose.msra.mxu0 0.0
    %248 = vmatprep.subr.mxu0 0.0
    %249 = vmatpush1.xpose.msra.mxu0 0.0
    %250 = vmatprep.subr.mxu0 0.0
    %251 = vmatpush1.xpose.msra.mxu0 0.0
    %252 = vmatprep.subr.mxu0 0.0
    %253 = vmatpush1.xpose.msra.mxu0 0.0
    %254 = vmatprep.subr.mxu0 0.0
    %255 = vmatpush1.xpose.msra.mxu0 0.0
    %256 = vmatprep.subr.mxu0 0.0
    %257 = vmatpush1.xpose.msra.mxu0 0.0
    %258 = vmatprep.subr.mxu0 0.0
    %259 = vmatpush1.xpose.msra.mxu0 0.0
    %260 = vmatprep.subr.mxu0 0.0
    %261 = vmatpush1.xpose.msra.mxu0 0.0
    %262 = vmatprep.subr.mxu0 0.0
    %263 = vmatpush1.xpose.msra.mxu0 0.0
    %264 = vmatprep.subr.mxu0 0.0
    %265 = vmatpush1.xpose.msra.mxu0 0.0
    %266 = vmatprep.subr.mxu0 0.0
    %267 = vmatpush1.xpose.msra.mxu0 0.0
    %268 = vmatprep.subr.mxu0 0.0
    %269 = vmatpush1.xpose.msra.mxu0 0.0
    %270 = vmatprep.subr.mxu0 0.0
    %271 = vmatpush1.xpose.msra.mxu0 0.0
    %272 = vmatprep.subr.mxu0 0.0
    %273 = vmatpush1.xpose.msra.mxu0 0.0
    %274 = vmatprep.subr.mxu0 0.0
    %275 = vmatpush1.xpose.msra.mxu0 0.0
    %276 = vmatprep.subr.mxu0 0.0
    %277 = vmatpush1.xpose.msra.mxu0 0.0
    %278 = vmatprep.subr.mxu0 0.0
    %279 = vmatpush1.xpose.msra.mxu0 0.0
    %280 = vmatprep.subr.mxu0 0.0
    %281 = vmatpush1.xpose.msra.mxu0 0.0
    %282 = vmatprep.subr.mxu0 0.0
    %283 = vmatpush1.xpose.msra.mxu0 0.0
    %284 = vmatprep.subr.mxu0 0.0
    %285 = vmatpush1.xpose.msra.mxu0 0.0
    %286 = vmatprep.mubr.f32.mxu0 0.0
    %287 = vmatmul.mubr.f32.gmra.mrb[0].mxu0 %v214
    %v288 = vpop.f32.mrb[0].mxu0
    %v289 = vadd.f32 0.0, %v288
    %v290 = vpop.f32.mrb[0].mxu0
    %291 = vdwg.mxu0
    %v292 = vlaneseq
    %v293 = vshrl.u32 %v292, 7
    %v294 = vsub.s32 0, %v293
    %v295 = vrot.slane %v289, %v294
    %v296 = vadd.f32 %v209, %v295
    %v297 = vadd.f32 %v212, %v295
    %vm298 = vcmp.gt.f32.partialorder %v296, 0.0
    %vm299 = vcmp.gt.f32.partialorder %v297, 0.0
    %v300 = vmul.f32 %v296, 0.2
    %v301 = vmul.f32 %v297, 0.2
    %v302 = vsel %vm298, %v296, %v300
    %v303 = vsel %vm299, %v297, %v301
    %v304 = vsel %vm110, %v302, -9e+15
    %v305 = vsel %vm111, %v303, -9e+15
    %v306 = vsel %vm114, %v304, -inf
    %307 = vmax.xlane.f32.xlu0 %v306
    %v308 = vpop.xlane.xlu0 %307
    %v309 = vsel %vm114, %v305, -inf
    %310 = vmax.xlane.f32.xlu0 %v309
    %v311 = vpop.xlane.xlu0 %310
    %v312 = vsub.f32 %v304, %v308
    %v313 = vsub.f32 %v305, %v311
    %v314 = vmul.f32 %v312, 1.442695
    %v315 = vpow.pop %v314
    %v316 = vmul.f32 %v313, 1.442695
    %v317 = vpow.pop %v316
    %v318 = vsel %vm114, %v315, 0.0
    %319 = vadd.xlane.f32.xlu0 %v318
    %v320 = vpop.xlane.xlu0 %319
    %v321 = vsel %vm114, %v317, 0.0
    %322 = vadd.xlane.f32.xlu0 %v321
    %v323 = vpop.xlane.xlu0 %322
    %v324 = vrcp.pop %v320
    %v325 = vrcp.pop %v323
    %v326 = vmul.f32 %v315, %v324
    %v327 = vmul.f32 %v317, %v325
    %v329 = vsel %vm114, %v326, 0
    %v332 = vsel %vm114, %v327, 0
    %334 = vmatprep.subr.mxu0 0.0
    %335 = vmatpush1.msra.mxu0 %v188
    %336 = vmatprep.subr.mxu0 0.0
    %337 = vmatpush1.msra.mxu0 %v193
    %338 = vmatprep.subr.mxu0 0.0
    %339 = vmatpush1.msra.mxu0 0.0
    %340 = vmatprep.subr.mxu0 0.0
    %341 = vmatpush1.msra.mxu0 0.0
    %342 = vmatprep.subr.mxu0 0.0
    %343 = vmatpush1.msra.mxu0 0.0
    %344 = vmatprep.subr.mxu0 0.0
    %345 = vmatpush1.msra.mxu0 0.0
    %346 = vmatprep.subr.mxu0 0.0
    %347 = vmatpush1.msra.mxu0 0.0
    %348 = vmatprep.subr.mxu0 0.0
    %349 = vmatpush1.msra.mxu0 0.0
    %350 = vmatprep.subr.mxu0 0.0
    %351 = vmatpush1.msra.mxu0 0.0
    %352 = vmatprep.subr.mxu0 0.0
    %353 = vmatpush1.msra.mxu0 0.0
    %354 = vmatprep.subr.mxu0 0.0
    %355 = vmatpush1.msra.mxu0 0.0
    %356 = vmatprep.subr.mxu0 0.0
    %357 = vmatpush1.msra.mxu0 0.0
    %358 = vmatprep.subr.mxu0 0.0
    %359 = vmatpush1.msra.mxu0 0.0
    %360 = vmatprep.subr.mxu0 0.0
    %361 = vmatpush1.msra.mxu0 0.0
    %362 = vmatprep.subr.mxu0 0.0
    %363 = vmatpush1.msra.mxu0 0.0
    %364 = vmatprep.subr.mxu0 0.0
    %365 = vmatpush1.msra.mxu0 0.0
    %366 = vmatprep.subr.mxu0 0.0
    %367 = vmatpush1.msra.mxu0 0.0
    %368 = vmatprep.subr.mxu0 0.0
    %369 = vmatpush1.msra.mxu0 0.0
    %370 = vmatprep.subr.mxu0 0.0
    %371 = vmatpush1.msra.mxu0 0.0
    %372 = vmatprep.subr.mxu0 0.0
    %373 = vmatpush1.msra.mxu0 0.0
    %374 = vmatprep.subr.mxu0 0.0
    %375 = vmatpush1.msra.mxu0 0.0
    %376 = vmatprep.subr.mxu0 0.0
    %377 = vmatpush1.msra.mxu0 0.0
    %378 = vmatprep.subr.mxu0 0.0
    %379 = vmatpush1.msra.mxu0 0.0
    %380 = vmatprep.subr.mxu0 0.0
    %381 = vmatpush1.msra.mxu0 0.0
    %382 = vmatprep.subr.mxu0 0.0
    %383 = vmatpush1.msra.mxu0 0.0
    %384 = vmatprep.subr.mxu0 0.0
    %385 = vmatpush1.msra.mxu0 0.0
    %386 = vmatprep.subr.mxu0 0.0
    %387 = vmatpush1.msra.mxu0 0.0
    %388 = vmatprep.subr.mxu0 0.0
    %389 = vmatpush1.msra.mxu0 0.0
    %390 = vmatprep.subr.mxu0 0.0
    %391 = vmatpush1.msra.mxu0 0.0
    %392 = vmatprep.subr.mxu0 0.0
    %393 = vmatpush1.msra.mxu0 0.0
    %394 = vmatprep.subr.mxu0 0.0
    %395 = vmatpush1.msra.mxu0 0.0
    %396 = vmatprep.subr.mxu0 0.0
    %397 = vmatpush1.msra.mxu0 0.0
    %398 = vmatprep.mubr.f32.mxu0 0.0
    %399 = vmatmul.mubr.f32.gmra.mrb[0].mxu0 %v329
    %v400 = vpop.f32.mrb[0].mxu0
    %v401 = vadd.f32 0.0, %v400
    %v402 = vpop.f32.mrb[0].mxu0
    %403 = vmatprep.mubr.f32.mxu0 0.0
    %404 = vmatmul.mubr.f32.gmra.mrb[0].mxu0 %v332
    %v405 = vpop.f32.mrb[0].mxu0
    %v406 = vadd.f32 0.0, %v405
    %v407 = vpop.f32.mrb[0].mxu0
    %408 = vdwg.mxu0
    %vm409 = vcmp.gt.f32.partialorder %v401, 0.0
    %vm410 = vcmp.gt.f32.partialorder %v406, 0.0
    %v411 = vmin.f32 %v401, 0.0
    %v412 = vmin.f32 %v406, 0.0
    %v413 = vmul.f32 %v411, 1.442695
    %v414 = vpow.pop %v413
    %v415 = vmul.f32 %v412, 1.442695
    %v416 = vpow.pop %v415
    %v417 = vsub.f32 %v414, 1.0
    %v418 = vsub.f32 %v416, 1.0
    %v419 = vsel %vm409, %v401, %v417
    %v420 = vsel %vm410, %v406, %v418
    %v421 = vld [vmem:[%s5] sm:$0xff]
    %s422 = scalar_lea.vmem %s2, 16
    %v423 = vld [vmem:[%s422] sm:$0xff]
    %v424 = vld [vmem:[%s422 + $0x8] sm:$0xff]
    %425 = vmatprep.subr.mxu0 0.0
    %426 = vmatpush1.msra.mxu0 %v423
    %427 = vmatprep.subr.mxu0 0.0
    %428 = vmatpush1.msra.mxu0 %v424
    %429 = vmatprep.subr.mxu0 0.0
    %430 = vmatpush1.msra.mxu0 0.0
    %431 = vmatprep.subr.mxu0 0.0
    %432 = vmatpush1.msra.mxu0 0.0
    %433 = vmatprep.subr.mxu0 0.0
    %434 = vmatpush1.msra.mxu0 0.0
    %435 = vmatprep.subr.mxu0 0.0
    %436 = vmatpush1.msra.mxu0 0.0
    %437 = vmatprep.subr.mxu0 0.0
    %438 = vmatpush1.msra.mxu0 0.0
    %439 = vmatprep.subr.mxu0 0.0
    %440 = vmatpush1.msra.mxu0 0.0
    %441 = vmatprep.subr.mxu0 0.0
    %442 = vmatpush1.msra.mxu0 0.0
    %443 = vmatprep.subr.mxu0 0.0
    %444 = vmatpush1.msra.mxu0 0.0
    %445 = vmatprep.subr.mxu0 0.0
    %446 = vmatpush1.msra.mxu0 0.0
    %447 = vmatprep.subr.mxu0 0.0
    %448 = vmatpush1.msra.mxu0 0.0
    %449 = vmatprep.subr.mxu0 0.0
    %450 = vmatpush1.msra.mxu0 0.0
    %451 = vmatprep.subr.mxu0 0.0
    %452 = vmatpush1.msra.mxu0 0.0
    %453 = vmatprep.subr.mxu0 0.0
    %454 = vmatpush1.msra.mxu0 0.0
    %455 = vmatprep.subr.mxu0 0.0
    %456 = vmatpush1.msra.mxu0 0.0
    %457 = vmatprep.subr.mxu0 0.0
    %458 = vmatpush1.msra.mxu0 0.0
    %459 = vmatprep.subr.mxu0 0.0
    %460 = vmatpush1.msra.mxu0 0.0
    %461 = vmatprep.subr.mxu0 0.0
    %462 = vmatpush1.msra.mxu0 0.0
    %463 = vmatprep.subr.mxu0 0.0
    %464 = vmatpush1.msra.mxu0 0.0
    %465 = vmatprep.subr.mxu0 0.0
    %466 = vmatpush1.msra.mxu0 0.0
    %467 = vmatprep.subr.mxu0 0.0
    %468 = vmatpush1.msra.mxu0 0.0
    %469 = vmatprep.subr.mxu0 0.0
    %470 = vmatpush1.msra.mxu0 0.0
    %471 = vmatprep.subr.mxu0 0.0
    %472 = vmatpush1.msra.mxu0 0.0
    %473 = vmatprep.subr.mxu0 0.0
    %474 = vmatpush1.msra.mxu0 0.0
    %475 = vmatprep.subr.mxu0 0.0
    %476 = vmatpush1.msra.mxu0 0.0
    %477 = vmatprep.subr.mxu0 0.0
    %478 = vmatpush1.msra.mxu0 0.0
    %479 = vmatprep.subr.mxu0 0.0
    %480 = vmatpush1.msra.mxu0 0.0
    %481 = vmatprep.subr.mxu0 0.0
    %482 = vmatpush1.msra.mxu0 0.0
    %483 = vmatprep.subr.mxu0 0.0
    %484 = vmatpush1.msra.mxu0 0.0
    %485 = vmatprep.subr.mxu0 0.0
    %486 = vmatpush1.msra.mxu0 0.0
    %487 = vmatprep.subr.mxu0 0.0
    %488 = vmatpush1.msra.mxu0 0.0
    %489 = vmatprep.mubr.f32.mxu0 0.0
    %490 = vmatmul.mubr.f32.gmra.mrb[0].mxu0 %v116
    %v491 = vpop.f32.mrb[0].mxu0
    %v492 = vadd.f32 0.0, %v491
    %v493 = vpop.f32.mrb[0].mxu0
    %494 = vmatprep.mubr.f32.mxu0 0.0
    %495 = vmatmul.mubr.f32.gmra.mrb[0].mxu0 %v119
    %v496 = vpop.f32.mrb[0].mxu0
    %v497 = vadd.f32 0.0, %v496
    %v498 = vpop.f32.mrb[0].mxu0
    %499 = vdwg.mxu0
    %s500 = scalar_lea.vmem %s3, 1
    %v501 = vld [vmem:[%s500] sm:$0x1]
    %s502 = scalar_lea.vmem [#allocation5], 1
    %v503 = vld [vmem:[%s502] sm:$0x1]
    %v505 = vlaneseq
    %v506 = vshrl.u32 %v505, 7
    %v507 = vsub.s32 0, %v506
    %v508 = vrot.slane %v501, %v507
    %v510 = vmul.f32 %v492, %v508
    %v511 = vmul.f32 %v497, %v508
    %v512 = vsel %vm206, %v510, 0.0
    %513 = vadd.xlane.f32.xlu0 %v512
    %v514 = vpop.xlane.xlu0 %513
    %v515 = vsel %vm206, %v511, 0.0
    %516 = vadd.xlane.f32.xlu0 %v515
    %v517 = vpop.xlane.xlu0 %516
    %v519 = vsel %vm206, %v503, 0
    %v522 = vsel %vm206, %v492, 0
    %v525 = vsel %vm206, %v497, 0
    %527 = vmatprep.subr.mxu0 0.0
    %528 = vmatpush1.xpose.msra.mxu0 %v522
    %529 = vmatprep.subr.mxu0 0.0
    %530 = vmatpush1.xpose.msra.mxu0 %v525
    %531 = vmatprep.subr.mxu0 0.0
    %532 = vmatpush1.xpose.msra.mxu0 0.0
    %533 = vmatprep.subr.mxu0 0.0
    %534 = vmatpush1.xpose.msra.mxu0 0.0
    %535 = vmatprep.subr.mxu0 0.0
    %536 = vmatpush1.xpose.msra.mxu0 0.0
    %537 = vmatprep.subr.mxu0 0.0
    %538 = vmatpush1.xpose.msra.mxu0 0.0
    %539 = vmatprep.subr.mxu0 0.0
    %540 = vmatpush1.xpose.msra.mxu0 0.0
    %541 = vmatprep.subr.mxu0 0.0
    %542 = vmatpush1.xpose.msra.mxu0 0.0
    %543 = vmatprep.subr.mxu0 0.0
    %544 = vmatpush1.xpose.msra.mxu0 0.0
    %545 = vmatprep.subr.mxu0 0.0
    %546 = vmatpush1.xpose.msra.mxu0 0.0
    %547 = vmatprep.subr.mxu0 0.0
    %548 = vmatpush1.xpose.msra.mxu0 0.0
    %549 = vmatprep.subr.mxu0 0.0
    %550 = vmatpush1.xpose.msra.mxu0 0.0
    %551 = vmatprep.subr.mxu0 0.0
    %552 = vmatpush1.xpose.msra.mxu0 0.0
    %553 = vmatprep.subr.mxu0 0.0
    %554 = vmatpush1.xpose.msra.mxu0 0.0
    %555 = vmatprep.subr.mxu0 0.0
    %556 = vmatpush1.xpose.msra.mxu0 0.0
    %557 = vmatprep.subr.mxu0 0.0
    %558 = vmatpush1.xpose.msra.mxu0 0.0
    %559 = vmatprep.subr.mxu0 0.0
    %560 = vmatpush1.xpose.msra.mxu0 0.0
    %561 = vmatprep.subr.mxu0 0.0
    %562 = vmatpush1.xpose.msra.mxu0 0.0
    %563 = vmatprep.subr.mxu0 0.0
    %564 = vmatpush1.xpose.msra.mxu0 0.0
    %565 = vmatprep.subr.mxu0 0.0
    %566 = vmatpush1.xpose.msra.mxu0 0.0
    %567 = vmatprep.subr.mxu0 0.0
    %568 = vmatpush1.xpose.msra.mxu0 0.0
    %569 = vmatprep.subr.mxu0 0.0
    %570 = vmatpush1.xpose.msra.mxu0 0.0
    %571 = vmatprep.subr.mxu0 0.0
    %572 = vmatpush1.xpose.msra.mxu0 0.0
    %573 = vmatprep.subr.mxu0 0.0
    %574 = vmatpush1.xpose.msra.mxu0 0.0
    %575 = vmatprep.subr.mxu0 0.0
    %576 = vmatpush1.xpose.msra.mxu0 0.0
    %577 = vmatprep.subr.mxu0 0.0
    %578 = vmatpush1.xpose.msra.mxu0 0.0
    %579 = vmatprep.subr.mxu0 0.0
    %580 = vmatpush1.xpose.msra.mxu0 0.0
    %581 = vmatprep.subr.mxu0 0.0
    %582 = vmatpush1.xpose.msra.mxu0 0.0
    %583 = vmatprep.subr.mxu0 0.0
    %584 = vmatpush1.xpose.msra.mxu0 0.0
    %585 = vmatprep.subr.mxu0 0.0
    %586 = vmatpush1.xpose.msra.mxu0 0.0
    %587 = vmatprep.subr.mxu0 0.0
    %588 = vmatpush1.xpose.msra.mxu0 0.0
    %589 = vmatprep.subr.mxu0 0.0
    %590 = vmatpush1.xpose.msra.mxu0 0.0
    %591 = vmatprep.mubr.f32.mxu0 0.0
    %592 = vmatmul.mubr.f32.gmra.mrb[0].mxu0 %v519
    %v593 = vpop.f32.mrb[0].mxu0
    %v594 = vadd.f32 0.0, %v593
    %v595 = vpop.f32.mrb[0].mxu0
    %596 = vdwg.mxu0
    %v597 = vlaneseq
    %v598 = vshrl.u32 %v597, 7
    %v599 = vsub.s32 0, %v598
    %v600 = vrot.slane %v594, %v599
    %v601 = vadd.f32 %v514, %v600
    %v602 = vadd.f32 %v517, %v600
    %vm603 = vcmp.gt.f32.partialorder %v601, 0.0
    %vm604 = vcmp.gt.f32.partialorder %v602, 0.0
    %v605 = vmul.f32 %v601, 0.2
    %v606 = vmul.f32 %v602, 0.2
    %v607 = vsel %vm603, %v601, %v605
    %v608 = vsel %vm604, %v602, %v606
    %v609 = vsel %vm110, %v607, -9e+15
    %v610 = vsel %vm111, %v608, -9e+15
    %v611 = vsel %vm114, %v609, -inf
    %612 = vmax.xlane.f32.xlu0 %v611
    %v613 = vpop.xlane.xlu0 %612
    %v614 = vsel %vm114, %v610, -inf
    %615 = vmax.xlane.f32.xlu0 %v614
    %v616 = vpop.xlane.xlu0 %615
    %v617 = vsub.f32 %v609, %v613
    %v618 = vsub.f32 %v610, %v616
    %v619 = vmul.f32 %v617, 1.442695
    %v620 = vpow.pop %v619
    %v621 = vmul.f32 %v618, 1.442695
    %v622 = vpow.pop %v621
    %v623 = vsel %vm114, %v620, 0.0
    %624 = vadd.xlane.f32.xlu0 %v623
    %v625 = vpop.xlane.xlu0 %624
    %v626 = vsel %vm114, %v622, 0.0
    %627 = vadd.xlane.f32.xlu0 %v626
    %v628 = vpop.xlane.xlu0 %627
    %v629 = vrcp.pop %v625
    %v630 = vrcp.pop %v628
    %v631 = vmul.f32 %v620, %v629
    %v632 = vmul.f32 %v622, %v630
    %v634 = vsel %vm114, %v631, 0
    %v637 = vsel %vm114, %v632, 0
    %639 = vmatprep.subr.mxu0 0.0
    %640 = vmatpush1.msra.mxu0 %v492
    %641 = vmatprep.subr.mxu0 0.0
    %642 = vmatpush1.msra.mxu0 %v497
    %643 = vmatprep.subr.mxu0 0.0
    %644 = vmatpush1.msra.mxu0 0.0
    %645 = vmatprep.subr.mxu0 0.0
    %646 = vmatpush1.msra.mxu0 0.0
    %647 = vmatprep.subr.mxu0 0.0
    %648 = vmatpush1.msra.mxu0 0.0
    %649 = vmatprep.subr.mxu0 0.0
    %650 = vmatpush1.msra.mxu0 0.0
    %651 = vmatprep.subr.mxu0 0.0
    %652 = vmatpush1.msra.mxu0 0.0
    %653 = vmatprep.subr.mxu0 0.0
    %654 = vmatpush1.msra.mxu0 0.0
    %655 = vmatprep.subr.mxu0 0.0
    %656 = vmatpush1.msra.mxu0 0.0
    %657 = vmatprep.subr.mxu0 0.0
    %658 = vmatpush1.msra.mxu0 0.0
    %659 = vmatprep.subr.mxu0 0.0
    %660 = vmatpush1.msra.mxu0 0.0
    %661 = vmatprep.subr.mxu0 0.0
    %662 = vmatpush1.msra.mxu0 0.0
    %663 = vmatprep.subr.mxu0 0.0
    %664 = vmatpush1.msra.mxu0 0.0
    %665 = vmatprep.subr.mxu0 0.0
    %666 = vmatpush1.msra.mxu0 0.0
    %667 = vmatprep.subr.mxu0 0.0
    %668 = vmatpush1.msra.mxu0 0.0
    %669 = vmatprep.subr.mxu0 0.0
    %670 = vmatpush1.msra.mxu0 0.0
    %671 = vmatprep.subr.mxu0 0.0
    %672 = vmatpush1.msra.mxu0 0.0
    %673 = vmatprep.subr.mxu0 0.0
    %674 = vmatpush1.msra.mxu0 0.0
    %675 = vmatprep.subr.mxu0 0.0
    %676 = vmatpush1.msra.mxu0 0.0
    %677 = vmatprep.subr.mxu0 0.0
    %678 = vmatpush1.msra.mxu0 0.0
    %679 = vmatprep.subr.mxu0 0.0
    %680 = vmatpush1.msra.mxu0 0.0
    %681 = vmatprep.subr.mxu0 0.0
    %682 = vmatpush1.msra.mxu0 0.0
    %683 = vmatprep.subr.mxu0 0.0
    %684 = vmatpush1.msra.mxu0 0.0
    %685 = vmatprep.subr.mxu0 0.0
    %686 = vmatpush1.msra.mxu0 0.0
    %687 = vmatprep.subr.mxu0 0.0
    %688 = vmatpush1.msra.mxu0 0.0
    %689 = vmatprep.subr.mxu0 0.0
    %690 = vmatpush1.msra.mxu0 0.0
    %691 = vmatprep.subr.mxu0 0.0
    %692 = vmatpush1.msra.mxu0 0.0
    %693 = vmatprep.subr.mxu0 0.0
    %694 = vmatpush1.msra.mxu0 0.0
    %695 = vmatprep.subr.mxu0 0.0
    %696 = vmatpush1.msra.mxu0 0.0
    %697 = vmatprep.subr.mxu0 0.0
    %698 = vmatpush1.msra.mxu0 0.0
    %699 = vmatprep.subr.mxu0 0.0
    %700 = vmatpush1.msra.mxu0 0.0
    %701 = vmatprep.subr.mxu0 0.0
    %702 = vmatpush1.msra.mxu0 0.0
    %703 = vmatprep.mubr.f32.mxu0 0.0
    %704 = vmatmul.mubr.f32.gmra.mrb[0].mxu0 %v634
    %v705 = vpop.f32.mrb[0].mxu0
    %v706 = vadd.f32 0.0, %v705
    %v707 = vpop.f32.mrb[0].mxu0
    %708 = vmatprep.mubr.f32.mxu0 0.0
    %709 = vmatmul.mubr.f32.gmra.mrb[0].mxu0 %v637
    %v710 = vpop.f32.mrb[0].mxu0
    %v711 = vadd.f32 0.0, %v710
    %v712 = vpop.f32.mrb[0].mxu0
    %713 = vdwg.mxu0
    %vm714 = vcmp.gt.f32.partialorder %v706, 0.0
    %vm715 = vcmp.gt.f32.partialorder %v711, 0.0
    %v716 = vmin.f32 %v706, 0.0
    %v717 = vmin.f32 %v711, 0.0
    %v718 = vmul.f32 %v716, 1.442695
    %v719 = vpow.pop %v718
    %v720 = vmul.f32 %v717, 1.442695
    %v721 = vpow.pop %v720
    %v722 = vsub.f32 %v719, 1.0
    %v723 = vsub.f32 %v721, 1.0
    %v724 = vsel %vm714, %v706, %v722
    %v725 = vsel %vm715, %v711, %v723
    %s726 = scalar_lea.vmem %s5, 8
    %v727 = vld [vmem:[%s726] sm:$0xff]
    %v729 = vsel %vm206, %v724, 0
    %v732 = vsel %vm206, %v725, 0
    %734 = vmatprep.subr.mxu0 0.0
    %735 = vmatpush1.msra.mxu0 %v727
    %736 = vmatprep.subr.mxu0 0.0
    %737 = vmatpush1.msra.mxu0 0.0
    %738 = vmatprep.subr.mxu0 0.0
    %739 = vmatpush1.msra.mxu0 0.0
    %740 = vmatprep.subr.mxu0 0.0
    %741 = vmatpush1.msra.mxu0 0.0
    %742 = vmatprep.subr.mxu0 0.0
    %743 = vmatpush1.msra.mxu0 0.0
    %744 = vmatprep.subr.mxu0 0.0
    %745 = vmatpush1.msra.mxu0 0.0
    %746 = vmatprep.subr.mxu0 0.0
    %747 = vmatpush1.msra.mxu0 0.0
    %748 = vmatprep.subr.mxu0 0.0
    %749 = vmatpush1.msra.mxu0 0.0
    %750 = vmatprep.subr.mxu0 0.0
    %751 = vmatpush1.msra.mxu0 0.0
    %752 = vmatprep.subr.mxu0 0.0
    %753 = vmatpush1.msra.mxu0 0.0
    %754 = vmatprep.subr.mxu0 0.0
    %755 = vmatpush1.msra.mxu0 0.0
    %756 = vmatprep.subr.mxu0 0.0
    %757 = vmatpush1.msra.mxu0 0.0
    %758 = vmatprep.subr.mxu0 0.0
    %759 = vmatpush1.msra.mxu0 0.0
    %760 = vmatprep.subr.mxu0 0.0
    %761 = vmatpush1.msra.mxu0 0.0
    %762 = vmatprep.subr.mxu0 0.0
    %763 = vmatpush1.msra.mxu0 0.0
    %764 = vmatprep.subr.mxu0 0.0
    %765 = vmatpush1.msra.mxu0 0.0
    %766 = vmatprep.subr.mxu0 0.0
    %767 = vmatpush1.msra.mxu0 0.0
    %768 = vmatprep.subr.mxu0 0.0
    %769 = vmatpush1.msra.mxu0 0.0
    %770 = vmatprep.subr.mxu0 0.0
    %771 = vmatpush1.msra.mxu0 0.0
    %772 = vmatprep.subr.mxu0 0.0
    %773 = vmatpush1.msra.mxu0 0.0
    %774 = vmatprep.subr.mxu0 0.0
    %775 = vmatpush1.msra.mxu0 0.0
    %776 = vmatprep.subr.mxu0 0.0
    %777 = vmatpush1.msra.mxu0 0.0
    %778 = vmatprep.subr.mxu0 0.0
    %779 = vmatpush1.msra.mxu0 0.0
    %780 = vmatprep.subr.mxu0 0.0
    %781 = vmatpush1.msra.mxu0 0.0
    %782 = vmatprep.subr.mxu0 0.0
    %783 = vmatpush1.msra.mxu0 0.0
    %784 = vmatprep.subr.mxu0 0.0
    %785 = vmatpush1.msra.mxu0 0.0
    %786 = vmatprep.subr.mxu0 0.0
    %787 = vmatpush1.msra.mxu0 0.0
    %788 = vmatprep.subr.mxu0 0.0
    %789 = vmatpush1.msra.mxu0 0.0
    %790 = vmatprep.subr.mxu0 0.0
    %791 = vmatpush1.msra.mxu0 0.0
    %792 = vmatprep.subr.mxu0 0.0
    %793 = vmatpush1.msra.mxu0 0.0
    %794 = vmatprep.subr.mxu0 0.0
    %795 = vmatpush1.msra.mxu0 0.0
    %796 = vmatprep.subr.mxu0 0.0
    %797 = vmatpush1.msra.mxu0 0.0
    %798 = vmatprep.mubr.f32.mxu0 0.0
    %799 = vmatmul.mubr.f32.gmra.mrb[0].mxu0 %v729
    %v800 = vpop.f32.mrb[0].mxu0
    %v801 = vadd.f32 0.0, %v800
    %v802 = vpop.f32.mrb[0].mxu0
    %803 = vmatprep.mubr.f32.mxu0 0.0
    %804 = vmatmul.mubr.f32.gmra.mrb[0].mxu0 %v732
    %v805 = vpop.f32.mrb[0].mxu0
    %v806 = vadd.f32 0.0, %v805
    %v807 = vpop.f32.mrb[0].mxu0
    %808 = vdwg.mxu0
    %v810 = vsel %vm206, %v419, 0
    %v813 = vsel %vm206, %v420, 0
    %815 = vmatprep.subr.mxu0 0.0
    %816 = vmatpush1.msra.mxu0 %v421
    %817 = vmatprep.subr.mxu0 0.0
    %818 = vmatpush1.msra.mxu0 0.0
    %819 = vmatprep.subr.mxu0 0.0
    %820 = vmatpush1.msra.mxu0 0.0
    %821 = vmatprep.subr.mxu0 0.0
    %822 = vmatpush1.msra.mxu0 0.0
    %823 = vmatprep.subr.mxu0 0.0
    %824 = vmatpush1.msra.mxu0 0.0
    %825 = vmatprep.subr.mxu0 0.0
    %826 = vmatpush1.msra.mxu0 0.0
    %827 = vmatprep.subr.mxu0 0.0
    %828 = vmatpush1.msra.mxu0 0.0
    %829 = vmatprep.subr.mxu0 0.0
    %830 = vmatpush1.msra.mxu0 0.0
    %831 = vmatprep.subr.mxu0 0.0
    %832 = vmatpush1.msra.mxu0 0.0
    %833 = vmatprep.subr.mxu0 0.0
    %834 = vmatpush1.msra.mxu0 0.0
    %835 = vmatprep.subr.mxu0 0.0
    %836 = vmatpush1.msra.mxu0 0.0
    %837 = vmatprep.subr.mxu0 0.0
    %838 = vmatpush1.msra.mxu0 0.0
    %839 = vmatprep.subr.mxu0 0.0
    %840 = vmatpush1.msra.mxu0 0.0
    %841 = vmatprep.subr.mxu0 0.0
    %842 = vmatpush1.msra.mxu0 0.0
    %843 = vmatprep.subr.mxu0 0.0
    %844 = vmatpush1.msra.mxu0 0.0
    %845 = vmatprep.subr.mxu0 0.0
    %846 = vmatpush1.msra.mxu0 0.0
    %847 = vmatprep.subr.mxu0 0.0
    %848 = vmatpush1.msra.mxu0 0.0
    %849 = vmatprep.subr.mxu0 0.0
    %850 = vmatpush1.msra.mxu0 0.0
    %851 = vmatprep.subr.mxu0 0.0
    %852 = vmatpush1.msra.mxu0 0.0
    %853 = vmatprep.subr.mxu0 0.0
    %854 = vmatpush1.msra.mxu0 0.0
    %855 = vmatprep.subr.mxu0 0.0
    %856 = vmatpush1.msra.mxu0 0.0
    %857 = vmatprep.subr.mxu0 0.0
    %858 = vmatpush1.msra.mxu0 0.0
    %859 = vmatprep.subr.mxu0 0.0
    %860 = vmatpush1.msra.mxu0 0.0
    %861 = vmatprep.subr.mxu0 0.0
    %862 = vmatpush1.msra.mxu0 0.0
    %863 = vmatprep.subr.mxu0 0.0
    %864 = vmatpush1.msra.mxu0 0.0
    %865 = vmatprep.subr.mxu0 0.0
    %866 = vmatpush1.msra.mxu0 0.0
    %867 = vmatprep.subr.mxu0 0.0
    %868 = vmatpush1.msra.mxu0 0.0
    %869 = vmatprep.subr.mxu0 0.0
    %870 = vmatpush1.msra.mxu0 0.0
    %871 = vmatprep.subr.mxu0 0.0
    %872 = vmatpush1.msra.mxu0 0.0
    %873 = vmatprep.subr.mxu0 0.0
    %874 = vmatpush1.msra.mxu0 0.0
    %875 = vmatprep.subr.mxu0 0.0
    %876 = vmatpush1.msra.mxu0 0.0
    %877 = vmatprep.subr.mxu0 0.0
    %878 = vmatpush1.msra.mxu0 0.0
    %879 = vmatprep.mubr.f32.mxu0 0.0
    %880 = vmatmul.mubr.f32.gmra.mrb[0].mxu0 %v810
    %v881 = vpop.f32.mrb[0].mxu0
    %v882 = vadd.f32 %v801, %v881
    %v883 = vpop.f32.mrb[0].mxu0
    %884 = vmatprep.mubr.f32.mxu0 0.0
    %885 = vmatmul.mubr.f32.gmra.mrb[0].mxu0 %v813
    %v886 = vpop.f32.mrb[0].mxu0
    %v887 = vadd.f32 %v806, %v886
    %v888 = vpop.f32.mrb[0].mxu0
    %889 = vdwg.mxu0
    %v890 = vld [vmem:[#allocation7] sm:$0x1]
    %v891 = vld [vmem:[#allocation8] sm:$0x1]
    %v893 = vlaneseq
    %v894 = vshrl.u32 %v893, 7
    %v895 = vsub.s32 0, %v894
    %v896 = vrot.slane %v890, %v895
    %v898 = vmul.f32 %v882, %v896
    %v899 = vmul.f32 %v887, %v896
    %v900 = vsel %vm114, %v898, 0.0
    %901 = vadd.xlane.f32.xlu0 %v900
    %v902 = vpop.xlane.xlu0 %901
    %v903 = vsel %vm114, %v899, 0.0
    %904 = vadd.xlane.f32.xlu0 %v903
    %v905 = vpop.xlane.xlu0 %904
    %v907 = vsel %vm114, %v891, 0
    %v910 = vsel %vm114, %v882, 0
    %v913 = vsel %vm114, %v887, 0
    %915 = vmatprep.subr.mxu0 0.0
    %916 = vmatpush1.xpose.msra.mxu0 %v910
    %917 = vmatprep.subr.mxu0 0.0
    %918 = vmatpush1.xpose.msra.mxu0 %v913
    %919 = vmatprep.subr.mxu0 0.0
    %920 = vmatpush1.xpose.msra.mxu0 0.0
    %921 = vmatprep.subr.mxu0 0.0
    %922 = vmatpush1.xpose.msra.mxu0 0.0
    %923 = vmatprep.subr.mxu0 0.0
    %924 = vmatpush1.xpose.msra.mxu0 0.0
    %925 = vmatprep.subr.mxu0 0.0
    %926 = vmatpush1.xpose.msra.mxu0 0.0
    %927 = vmatprep.subr.mxu0 0.0
    %928 = vmatpush1.xpose.msra.mxu0 0.0
    %929 = vmatprep.subr.mxu0 0.0
    %930 = vmatpush1.xpose.msra.mxu0 0.0
    %931 = vmatprep.subr.mxu0 0.0
    %932 = vmatpush1.xpose.msra.mxu0 0.0
    %933 = vmatprep.subr.mxu0 0.0
    %934 = vmatpush1.xpose.msra.mxu0 0.0
    %935 = vmatprep.subr.mxu0 0.0
    %936 = vmatpush1.xpose.msra.mxu0 0.0
    %937 = vmatprep.subr.mxu0 0.0
    %938 = vmatpush1.xpose.msra.mxu0 0.0
    %939 = vmatprep.subr.mxu0 0.0
    %940 = vmatpush1.xpose.msra.mxu0 0.0
    %941 = vmatprep.subr.mxu0 0.0
    %942 = vmatpush1.xpose.msra.mxu0 0.0
    %943 = vmatprep.subr.mxu0 0.0
    %944 = vmatpush1.xpose.msra.mxu0 0.0
    %945 = vmatprep.subr.mxu0 0.0
    %946 = vmatpush1.xpose.msra.mxu0 0.0
    %947 = vmatprep.subr.mxu0 0.0
    %948 = vmatpush1.xpose.msra.mxu0 0.0
    %949 = vmatprep.subr.mxu0 0.0
    %950 = vmatpush1.xpose.msra.mxu0 0.0
    %951 = vmatprep.subr.mxu0 0.0
    %952 = vmatpush1.xpose.msra.mxu0 0.0
    %953 = vmatprep.subr.mxu0 0.0
    %954 = vmatpush1.xpose.msra.mxu0 0.0
    %955 = vmatprep.subr.mxu0 0.0
    %956 = vmatpush1.xpose.msra.mxu0 0.0
    %957 = vmatprep.subr.mxu0 0.0
    %958 = vmatpush1.xpose.msra.mxu0 0.0
    %959 = vmatprep.subr.mxu0 0.0
    %960 = vmatpush1.xpose.msra.mxu0 0.0
    %961 = vmatprep.subr.mxu0 0.0
    %962 = vmatpush1.xpose.msra.mxu0 0.0
    %963 = vmatprep.subr.mxu0 0.0
    %964 = vmatpush1.xpose.msra.mxu0 0.0
    %965 = vmatprep.subr.mxu0 0.0
    %966 = vmatpush1.xpose.msra.mxu0 0.0
    %967 = vmatprep.subr.mxu0 0.0
    %968 = vmatpush1.xpose.msra.mxu0 0.0
    %969 = vmatprep.subr.mxu0 0.0
    %970 = vmatpush1.xpose.msra.mxu0 0.0
    %971 = vmatprep.subr.mxu0 0.0
    %972 = vmatpush1.xpose.msra.mxu0 0.0
    %973 = vmatprep.subr.mxu0 0.0
    %974 = vmatpush1.xpose.msra.mxu0 0.0
    %975 = vmatprep.subr.mxu0 0.0
    %976 = vmatpush1.xpose.msra.mxu0 0.0
    %977 = vmatprep.subr.mxu0 0.0
    %978 = vmatpush1.xpose.msra.mxu0 0.0
    %979 = vmatprep.mubr.f32.mxu0 0.0
    %980 = vmatmul.mubr.f32.gmra.mrb[0].mxu0 %v907
    %v981 = vpop.f32.mrb[0].mxu0
    %v982 = vadd.f32 0.0, %v981
    %v983 = vpop.f32.mrb[0].mxu0
    %984 = vdwg.mxu0
    %v985 = vlaneseq
    %v986 = vshrl.u32 %v985, 7
    %v987 = vsub.s32 0, %v986
    %v988 = vrot.slane %v982, %v987
    %v989 = vadd.f32 %v902, %v988
    %v990 = vadd.f32 %v905, %v988
    %vm991 = vcmp.gt.f32.partialorder %v989, 0.0
    %vm992 = vcmp.gt.f32.partialorder %v990, 0.0
    %v993 = vmul.f32 %v989, 0.2
    %v994 = vmul.f32 %v990, 0.2
    %v995 = vsel %vm991, %v989, %v993
    %v996 = vsel %vm992, %v990, %v994
    %v997 = vsel %vm110, %v995, -9e+15
    %v998 = vsel %vm111, %v996, -9e+15
    %v999 = vsel %vm114, %v997, -inf
    %1000 = vmax.xlane.f32.xlu0 %v999
    %v1001 = vpop.xlane.xlu0 %1000
    %v1002 = vsel %vm114, %v998, -inf
    %1003 = vmax.xlane.f32.xlu0 %v1002
    %v1004 = vpop.xlane.xlu0 %1003
    %v1005 = vsub.f32 %v997, %v1001
    %v1006 = vsub.f32 %v998, %v1004
    %v1007 = vmul.f32 %v1005, 1.442695
    %v1008 = vpow.pop %v1007
    %v1009 = vmul.f32 %v1006, 1.442695
    %v1010 = vpow.pop %v1009
    %v1011 = vsel %vm114, %v1008, 0.0
    %1012 = vadd.xlane.f32.xlu0 %v1011
    %v1013 = vpop.xlane.xlu0 %1012
    %v1014 = vsel %vm114, %v1010, 0.0
    %1015 = vadd.xlane.f32.xlu0 %v1014
    %v1016 = vpop.xlane.xlu0 %1015
    %v1017 = vrcp.pop %v1013
    %v1018 = vrcp.pop %v1016
    %v1019 = vmul.f32 %v1008, %v1017
    %v1020 = vmul.f32 %v1010, %v1018
    %v1022 = vsel %vm114, %v1019, 0
    %v1025 = vsel %vm114, %v1020, 0
    %1027 = vmatprep.subr.mxu0 0.0
    %1028 = vmatpush1.msra.mxu0 %v882
    %1029 = vmatprep.subr.mxu0 0.0
    %1030 = vmatpush1.msra.mxu0 %v887
    %1031 = vmatprep.subr.mxu0 0.0
    %1032 = vmatpush1.msra.mxu0 0.0
    %1033 = vmatprep.subr.mxu0 0.0
    %1034 = vmatpush1.msra.mxu0 0.0
    %1035 = vmatprep.subr.mxu0 0.0
    %1036 = vmatpush1.msra.mxu0 0.0
    %1037 = vmatprep.subr.mxu0 0.0
    %1038 = vmatpush1.msra.mxu0 0.0
    %1039 = vmatprep.subr.mxu0 0.0
    %1040 = vmatpush1.msra.mxu0 0.0
    %1041 = vmatprep.subr.mxu0 0.0
    %1042 = vmatpush1.msra.mxu0 0.0
    %1043 = vmatprep.subr.mxu0 0.0
    %1044 = vmatpush1.msra.mxu0 0.0
    %1045 = vmatprep.subr.mxu0 0.0
    %1046 = vmatpush1.msra.mxu0 0.0
    %1047 = vmatprep.subr.mxu0 0.0
    %1048 = vmatpush1.msra.mxu0 0.0
    %1049 = vmatprep.subr.mxu0 0.0
    %1050 = vmatpush1.msra.mxu0 0.0
    %1051 = vmatprep.subr.mxu0 0.0
    %1052 = vmatpush1.msra.mxu0 0.0
    %1053 = vmatprep.subr.mxu0 0.0
    %1054 = vmatpush1.msra.mxu0 0.0
    %1055 = vmatprep.subr.mxu0 0.0
    %1056 = vmatpush1.msra.mxu0 0.0
    %1057 = vmatprep.subr.mxu0 0.0
    %1058 = vmatpush1.msra.mxu0 0.0
    %1059 = vmatprep.subr.mxu0 0.0
    %1060 = vmatpush1.msra.mxu0 0.0
    %1061 = vmatprep.subr.mxu0 0.0
    %1062 = vmatpush1.msra.mxu0 0.0
    %1063 = vmatprep.subr.mxu0 0.0
    %1064 = vmatpush1.msra.mxu0 0.0
    %1065 = vmatprep.subr.mxu0 0.0
    %1066 = vmatpush1.msra.mxu0 0.0
    %1067 = vmatprep.subr.mxu0 0.0
    %1068 = vmatpush1.msra.mxu0 0.0
    %1069 = vmatprep.subr.mxu0 0.0
    %1070 = vmatpush1.msra.mxu0 0.0
    %1071 = vmatprep.subr.mxu0 0.0
    %1072 = vmatpush1.msra.mxu0 0.0
    %1073 = vmatprep.subr.mxu0 0.0
    %1074 = vmatpush1.msra.mxu0 0.0
    %1075 = vmatprep.subr.mxu0 0.0
    %1076 = vmatpush1.msra.mxu0 0.0
    %1077 = vmatprep.subr.mxu0 0.0
    %1078 = vmatpush1.msra.mxu0 0.0
    %1079 = vmatprep.subr.mxu0 0.0
    %1080 = vmatpush1.msra.mxu0 0.0
    %1081 = vmatprep.subr.mxu0 0.0
    %1082 = vmatpush1.msra.mxu0 0.0
    %1083 = vmatprep.subr.mxu0 0.0
    %1084 = vmatpush1.msra.mxu0 0.0
    %1085 = vmatprep.subr.mxu0 0.0
    %1086 = vmatpush1.msra.mxu0 0.0
    %1087 = vmatprep.subr.mxu0 0.0
    %1088 = vmatpush1.msra.mxu0 0.0
    %1089 = vmatprep.subr.mxu0 0.0
    %1090 = vmatpush1.msra.mxu0 0.0
    %1091 = vmatprep.mubr.f32.mxu0 0.0
    %1092 = vmatmul.mubr.f32.gmra.mrb[0].mxu0 %v1022
    %v1093 = vpop.f32.mrb[0].mxu0
    %v1094 = vadd.f32 0.0, %v1093
    %v1095 = vpop.f32.mrb[0].mxu0
    %1096 = vmatprep.mubr.f32.mxu0 0.0
    %1097 = vmatmul.mubr.f32.gmra.mrb[0].mxu0 %v1025
    %v1098 = vpop.f32.mrb[0].mxu0
    %v1099 = vadd.f32 0.0, %v1098
    %v1100 = vpop.f32.mrb[0].mxu0
    %1101 = vdwg.mxu0
    %v1102 = vsel %vm114, %v1094, 0.0
    %v1103 = vsel %vm114, %v1099, 0.0
    %v1104 = vadd.f32 %v1102, %v1103
    %v1105 = vrot.slane %v1104, 4
    %v1106 = vadd.f32 %v1104, %v1105
    %v1107 = vrot.slane %v1106, 2
    %v1108 = vadd.f32 %v1106, %v1107
    %v1109 = vrot.slane %v1108, 1
    %v1110 = vadd.f32 %v1108, %v1109
    %v1111 = vrcp.pop 16.0
    %v1112 = vmul.f32 %v1110, %v1111
    %v1113 = vld [vmem:[%s8] sm:$0xff]
    %v1114 = vld [vmem:[%s8 + $0x8] sm:$0xff]
    %v1115 = vld [vmem:[#allocation10] sm:$0x1]
    %v1117 = vsel %vm114, %v1112, 0
    %1119 = vmatprep.subr.mxu0 0.0
    %1120 = vmatpush1.msra.mxu0 %v1113
    %1121 = vmatprep.subr.mxu0 0.0
    %1122 = vmatpush1.msra.mxu0 %v1114
    %1123 = vmatprep.subr.mxu0 0.0
    %1124 = vmatpush1.msra.mxu0 0.0
    %1125 = vmatprep.subr.mxu0 0.0
    %1126 = vmatpush1.msra.mxu0 0.0
    %1127 = vmatprep.subr.mxu0 0.0
    %1128 = vmatpush1.msra.mxu0 0.0
    %1129 = vmatprep.subr.mxu0 0.0
    %1130 = vmatpush1.msra.mxu0 0.0
    %1131 = vmatprep.subr.mxu0 0.0
    %1132 = vmatpush1.msra.mxu0 0.0
    %1133 = vmatprep.subr.mxu0 0.0
    %1134 = vmatpush1.msra.mxu0 0.0
    %1135 = vmatprep.subr.mxu0 0.0
    %1136 = vmatpush1.msra.mxu0 0.0
    %1137 = vmatprep.subr.mxu0 0.0
    %1138 = vmatpush1.msra.mxu0 0.0
    %1139 = vmatprep.subr.mxu0 0.0
    %1140 = vmatpush1.msra.mxu0 0.0
    %1141 = vmatprep.subr.mxu0 0.0
    %1142 = vmatpush1.msra.mxu0 0.0
    %1143 = vmatprep.subr.mxu0 0.0
    %1144 = vmatpush1.msra.mxu0 0.0
    %1145 = vmatprep.subr.mxu0 0.0
    %1146 = vmatpush1.msra.mxu0 0.0
    %1147 = vmatprep.subr.mxu0 0.0
    %1148 = vmatpush1.msra.mxu0 0.0
    %1149 = vmatprep.subr.mxu0 0.0
    %1150 = vmatpush1.msra.mxu0 0.0
    %1151 = vmatprep.subr.mxu0 0.0
    %1152 = vmatpush1.msra.mxu0 0.0
    %1153 = vmatprep.subr.mxu0 0.0
    %1154 = vmatpush1.msra.mxu0 0.0
    %1155 = vmatprep.subr.mxu0 0.0
    %1156 = vmatpush1.msra.mxu0 0.0
    %1157 = vmatprep.subr.mxu0 0.0
    %1158 = vmatpush1.msra.mxu0 0.0
    %1159 = vmatprep.subr.mxu0 0.0
    %1160 = vmatpush1.msra.mxu0 0.0
    %1161 = vmatprep.subr.mxu0 0.0
    %1162 = vmatpush1.msra.mxu0 0.0
    %1163 = vmatprep.subr.mxu0 0.0
    %1164 = vmatpush1.msra.mxu0 0.0
    %1165 = vmatprep.subr.mxu0 0.0
    %1166 = vmatpush1.msra.mxu0 0.0
    %1167 = vmatprep.subr.mxu0 0.0
    %1168 = vmatpush1.msra.mxu0 0.0
    %1169 = vmatprep.subr.mxu0 0.0
    %1170 = vmatpush1.msra.mxu0 0.0
    %1171 = vmatprep.subr.mxu0 0.0
    %1172 = vmatpush1.msra.mxu0 0.0
    %1173 = vmatprep.subr.mxu0 0.0
    %1174 = vmatpush1.msra.mxu0 0.0
    %1175 = vmatprep.subr.mxu0 0.0
    %1176 = vmatpush1.msra.mxu0 0.0
    %1177 = vmatprep.subr.mxu0 0.0
    %1178 = vmatpush1.msra.mxu0 0.0
    %1179 = vmatprep.subr.mxu0 0.0
    %1180 = vmatpush1.msra.mxu0 0.0
    %1181 = vmatprep.subr.mxu0 0.0
    %1182 = vmatpush1.msra.mxu0 0.0
    %1183 = vmatprep.mubr.f32.mxu0 0.0
    %1184 = vmatmul.mubr.f32.gmra.mrb[0].mxu0 %v1117
    %v1185 = vpop.f32.mrb[0].mxu0
    %v1186 = vadd.f32 %v1115, %v1185
    %v1187 = vpop.f32.mrb[0].mxu0
    %1188 = vdwg.mxu0
    %v1189 = vmax.f32 %v1186, 0.0
    %s1190 = scalar_lea.vmem %s8, 16
    %v1191 = vld [vmem:[%s1190] sm:$0xff]
    %v1192 = vld [vmem:[%s1190 + $0x8] sm:$0xff]
    %s1193 = scalar_lea.vmem [#allocation10], 1
    %v1194 = vld [vmem:[%s1193] sm:$0x1]
    %v1196 = vsel %vm114, %v1189, 0
    %1198 = vmatprep.subr.mxu0 0.0
    %1199 = vmatpush1.msra.mxu0 %v1191
    %1200 = vmatprep.subr.mxu0 0.0
    %1201 = vmatpush1.msra.mxu0 %v1192
    %1202 = vmatprep.subr.mxu0 0.0
    %1203 = vmatpush1.msra.mxu0 0.0
    %1204 = vmatprep.subr.mxu0 0.0
    %1205 = vmatpush1.msra.mxu0 0.0
    %1206 = vmatprep.subr.mxu0 0.0
    %1207 = vmatpush1.msra.mxu0 0.0
    %1208 = vmatprep.subr.mxu0 0.0
    %1209 = vmatpush1.msra.mxu0 0.0
    %1210 = vmatprep.subr.mxu0 0.0
    %1211 = vmatpush1.msra.mxu0 0.0
    %1212 = vmatprep.subr.mxu0 0.0
    %1213 = vmatpush1.msra.mxu0 0.0
    %1214 = vmatprep.subr.mxu0 0.0
    %1215 = vmatpush1.msra.mxu0 0.0
    %1216 = vmatprep.subr.mxu0 0.0
    %1217 = vmatpush1.msra.mxu0 0.0
    %1218 = vmatprep.subr.mxu0 0.0
    %1219 = vmatpush1.msra.mxu0 0.0
    %1220 = vmatprep.subr.mxu0 0.0
    %1221 = vmatpush1.msra.mxu0 0.0
    %1222 = vmatprep.subr.mxu0 0.0
    %1223 = vmatpush1.msra.mxu0 0.0
    %1224 = vmatprep.subr.mxu0 0.0
    %1225 = vmatpush1.msra.mxu0 0.0
    %1226 = vmatprep.subr.mxu0 0.0
    %1227 = vmatpush1.msra.mxu0 0.0
    %1228 = vmatprep.subr.mxu0 0.0
    %1229 = vmatpush1.msra.mxu0 0.0
    %1230 = vmatprep.subr.mxu0 0.0
    %1231 = vmatpush1.msra.mxu0 0.0
    %1232 = vmatprep.subr.mxu0 0.0
    %1233 = vmatpush1.msra.mxu0 0.0
    %1234 = vmatprep.subr.mxu0 0.0
    %1235 = vmatpush1.msra.mxu0 0.0
    %1236 = vmatprep.subr.mxu0 0.0
    %1237 = vmatpush1.msra.mxu0 0.0
    %1238 = vmatprep.subr.mxu0 0.0
    %1239 = vmatpush1.msra.mxu0 0.0
    %1240 = vmatprep.subr.mxu0 0.0
    %1241 = vmatpush1.msra.mxu0 0.0
    %1242 = vmatprep.subr.mxu0 0.0
    %1243 = vmatpush1.msra.mxu0 0.0
    %1244 = vmatprep.subr.mxu0 0.0
    %1245 = vmatpush1.msra.mxu0 0.0
    %1246 = vmatprep.subr.mxu0 0.0
    %1247 = vmatpush1.msra.mxu0 0.0
    %1248 = vmatprep.subr.mxu0 0.0
    %1249 = vmatpush1.msra.mxu0 0.0
    %1250 = vmatprep.subr.mxu0 0.0
    %1251 = vmatpush1.msra.mxu0 0.0
    %1252 = vmatprep.subr.mxu0 0.0
    %1253 = vmatpush1.msra.mxu0 0.0
    %1254 = vmatprep.subr.mxu0 0.0
    %1255 = vmatpush1.msra.mxu0 0.0
    %1256 = vmatprep.subr.mxu0 0.0
    %1257 = vmatpush1.msra.mxu0 0.0
    %1258 = vmatprep.subr.mxu0 0.0
    %1259 = vmatpush1.msra.mxu0 0.0
    %1260 = vmatprep.subr.mxu0 0.0
    %1261 = vmatpush1.msra.mxu0 0.0
    %1262 = vmatprep.mubr.f32.mxu0 0.0
    %1263 = vmatmul.mubr.f32.gmra.mrb[0].mxu0 %v1196
    %v1264 = vpop.f32.mrb[0].mxu0
    %v1265 = vadd.f32 %v1194, %v1264
    %v1266 = vpop.f32.mrb[0].mxu0
    %1267 = vdwg.mxu0
    %v1268 = vmax.f32 %v1265, 0.0
    %v1269 = vld [vmem:[%s10] sm:$0xff]
    %v1270 = vld [vmem:[%s10 + $0x8] sm:$0xff]
    %v1271 = vld [vmem:[%s11] sm:$0x1]
    %v1273 = vsel %vm114, %v1268, 0
    %1275 = vmatprep.subr.mxu0 0.0
    %1276 = vmatpush1.msra.mxu0 %v1269
    %1277 = vmatprep.subr.mxu0 0.0
    %1278 = vmatpush1.msra.mxu0 %v1270
    %1279 = vmatprep.subr.mxu0 0.0
    %1280 = vmatpush1.msra.mxu0 0.0
    %1281 = vmatprep.subr.mxu0 0.0
    %1282 = vmatpush1.msra.mxu0 0.0
    %1283 = vmatprep.subr.mxu0 0.0
    %1284 = vmatpush1.msra.mxu0 0.0
    %1285 = vmatprep.subr.mxu0 0.0
    %1286 = vmatpush1.msra.mxu0 0.0
    %1287 = vmatprep.subr.mxu0 0.0
    %1288 = vmatpush1.msra.mxu0 0.0
    %1289 = vmatprep.subr.mxu0 0.0
    %1290 = vmatpush1.msra.mxu0 0.0
    %1291 = vmatprep.subr.mxu0 0.0
    %1292 = vmatpush1.msra.mxu0 0.0
    %1293 = vmatprep.subr.mxu0 0.0
    %1294 = vmatpush1.msra.mxu0 0.0
    %1295 = vmatprep.subr.mxu0 0.0
    %1296 = vmatpush1.msra.mxu0 0.0
    %1297 = vmatprep.subr.mxu0 0.0
    %1298 = vmatpush1.msra.mxu0 0.0
    %1299 = vmatprep.subr.mxu0 0.0
    %1300 = vmatpush1.msra.mxu0 0.0
    %1301 = vmatprep.subr.mxu0 0.0
    %1302 = vmatpush1.msra.mxu0 0.0
    %1303 = vmatprep.subr.mxu0 0.0
    %1304 = vmatpush1.msra.mxu0 0.0
    %1305 = vmatprep.subr.mxu0 0.0
    %1306 = vmatpush1.msra.mxu0 0.0
    %1307 = vmatprep.subr.mxu0 0.0
    %1308 = vmatpush1.msra.mxu0 0.0
    %1309 = vmatprep.subr.mxu0 0.0
    %1310 = vmatpush1.msra.mxu0 0.0
    %1311 = vmatprep.subr.mxu0 0.0
    %1312 = vmatpush1.msra.mxu0 0.0
    %1313 = vmatprep.subr.mxu0 0.0
    %1314 = vmatpush1.msra.mxu0 0.0
    %1315 = vmatprep.subr.mxu0 0.0
    %1316 = vmatpush1.msra.mxu0 0.0
    %1317 = vmatprep.subr.mxu0 0.0
    %1318 = vmatpush1.msra.mxu0 0.0
    %1319 = vmatprep.subr.mxu0 0.0
    %1320 = vmatpush1.msra.mxu0 0.0
    %1321 = vmatprep.subr.mxu0 0.0
    %1322 = vmatpush1.msra.mxu0 0.0
    %1323 = vmatprep.subr.mxu0 0.0
    %1324 = vmatpush1.msra.mxu0 0.0
    %1325 = vmatprep.subr.mxu0 0.0
    %1326 = vmatpush1.msra.mxu0 0.0
    %1327 = vmatprep.subr.mxu0 0.0
    %1328 = vmatpush1.msra.mxu0 0.0
    %1329 = vmatprep.subr.mxu0 0.0
    %1330 = vmatpush1.msra.mxu0 0.0
    %1331 = vmatprep.subr.mxu0 0.0
    %1332 = vmatpush1.msra.mxu0 0.0
    %1333 = vmatprep.subr.mxu0 0.0
    %1334 = vmatpush1.msra.mxu0 0.0
    %1335 = vmatprep.subr.mxu0 0.0
    %1336 = vmatpush1.msra.mxu0 0.0
    %1337 = vmatprep.subr.mxu0 0.0
    %1338 = vmatpush1.msra.mxu0 0.0
    %1339 = vmatprep.mubr.f32.mxu0 0.0
    %1340 = vmatmul.mubr.f32.gmra.mrb[0].mxu0 %v1273
    %v1341 = vpop.f32.mrb[0].mxu0
    %v1342 = vadd.f32 %v1271, %v1341
    %v1343 = vpop.f32.mrb[0].mxu0
    %1344 = vdwg.mxu0
    %v1345 = vlaneseq
    %v1346 = vand.u32 %v1345, 127
    %vm1347 = vcmp.lt.s32.totalorder %v1346, 4
    %v1348 = vsel %vm1347, %v1342, -9e+15
    %vm1349 = vcmask 1040384
    %v1350 = vsel %vm1349, %v1348, -inf
    %1351 = vmax.xlane.f32.xlu0 %v1350
    %v1352 = vpop.xlane.xlu0 %1351
    %v1353 = vsub.f32 %v1348, %v1352
    %v1354 = vmul.f32 %v1353, 1.442695
    %v1355 = vpow.pop %v1354
    %v1356 = vsel %vm1349, %v1355, 0.0
    %1357 = vadd.xlane.f32.xlu0 %v1356
    %v1358 = vpop.xlane.xlu0 %1357
    %v1359 = vrcp.pop %v1358
    %v1360 = vmul.f32 %v1355, %v1359
    %v1361 = vlaneseq
    %v1362 = vshrl.u32 %v1361, 7
    %v1363 = vsub.s32 0, %v1362
    %v1364 = vrot.slane %v1360, %v1363
    %1365 = vst [vmem:[#allocation11] sm:$0xff] %v1364
    // Predicated region
    $region70: #{tpu_custom_call.1} parent=1 // pred_check
      _
    $region71: #{tpu_custom_call.1} parent=1 // pred_check_branch
      %1367 = sbr.rel (0) target = $region73
    $region72: #{tpu_custom_call.1} parent=1 // pred_region
      %s1369 = ssub.s32 128, 128
      %1370 = vsyncadd [#allocation4], %s1369
      %s1372 = sshll.u32 [#allocation11], 4
      %s1373 = int_to_ptr.vmem [resolvable:$true] %s1372
      %1375 = dma.vmem_to_hbm [thread:$0]  %s1373, 128, %s12, [#allocation4]
    $region73: #{tpu_custom_call.1} parent=1 // pred_fallthru
      _
    // Predicated region
    $region74: #{tpu_custom_call.1} parent=1 // pred_check
      _
    $region75: #{tpu_custom_call.1} parent=1 // pred_check_branch
      %1377 = sbr.rel (0) target = $region77
    $region76: #{tpu_custom_call.1} parent=1 // pred_region
      %1378 = dma.done [#allocation4], 128
    $region77: #{tpu_custom_call.1} parent=1 // pred_fallthru
      _
    %1379 = vsyncpa [#allocation3], 1
    %1380 = vsyncpa [#allocation6], 1
    %1381 = vsyncpa [#allocation9], 1
    %1382 = vsyncpa [#allocation4], 1

</llo_original>
